<compile_context>
chip_gen: v7x
topology: tpu7x:2x2x1
jax: 0.10.0
libtpu: 0.0.40
codegen_flags: <defaults>
</compile_context>

<pallas_src>
import math
import functools

import jax
import jax.numpy as jnp
from jax import lax
from jax.scipy.special import i0e
from jax.experimental import pallas as pl
from jax.experimental.pallas import tpu as pltpu

# ---- idealized backbone geometry constants (the `constants` module) ----
L_C_N    = 1.329                    # C(i)-N(i+1) bond length   [Angstrom]
A_CA_C_N = math.radians(116.2)      # CA-C-N(+1) bond angle     [rad]
A_C_N_CA = math.radians(121.7)      # C-N(+1)-CA(+1) bond angle [rad]
OMEGA    = math.pi                  # trans peptide omega       [rad]

SIGMA = 0.1                         # module hyper-parameter

_LANES = 128
_CHUNK = 32                         # rows per in-kernel compute chunk
_MAX_TILE_ROWS = 2048               # rows per grid step (multiple of _CHUNK)
_NUM_CORE_SLICES = 2                # leading 'parallel' axis (both TCs on v7x)


# ----------------------- small vector helpers (xyz tuples) -----------------
def _vdot(u, v):
    return u[0] * v[0] + u[1] * v[1] + u[2] * v[2]


def _vcross(u, v):
    return (u[1] * v[2] - u[2] * v[1],
            u[2] * v[0] - u[0] * v[2],
            u[0] * v[1] - u[1] * v[0])


# ------------------- fast reciprocal / atan2 (y >= 0) -----------------------
def _fast_recip(x):
    """EUP approximate reciprocal + one Newton step (~f32 accuracy)."""
    r = pl.reciprocal(x, approx=True)
    return r * (2.0 - x * r)


def _atan01(r):
    """arctan(r) for r in [0, 1] (Cephes atanf low/mid branches)."""
    t_lo = 0.4142135623730950                   # tan(pi/8)
    mid = r > t_lo
    num = jnp.where(mid, r - 1.0, r)
    den = jnp.where(mid, r + 1.0, 1.0)          # den in [1, 2] -> safe recip
    xr = num * _fast_recip(den)
    y0 = jnp.where(mid, 0.25 * math.pi, 0.0)
    z = xr * xr
    p = (((8.05374449538e-2 * z - 1.38776856032e-1) * z
          + 1.99777106478e-1) * z - 3.33329491539e-1)
    return y0 + xr + xr * z * p


def _atan2_nonneg_y(y, x):
    """atan2(y, x) specialized for y >= 0 (result in [0, pi]); one reciprocal."""
    ax = jnp.abs(x)
    mn = jnp.minimum(y, ax)
    mx = jnp.maximum(y, ax)
    safe_mx = jnp.maximum(mx, 1e-37)            # guards 0 / denormal
    t = _atan01(mn * _fast_recip(safe_mx))
    a = jnp.where(y > ax, 0.5 * math.pi - t, t)
    return jnp.where(x < 0.0, math.pi - a, a)


# ------------------------------- the kernel ---------------------------------
def _bond_restraint_kernel(slab_ref, bl_ref, ba_ref, *,
                           half_inv_var, kappa, total,
                           tiles_per_core, tile_rows, chunk):
    # slab_ref: (9, tile_rows, 128) f32 = [dcn | b0 | b2] difference vectors
    # bl_ref / ba_ref: (8, 128) f32 lane-dense accumulators (per core slice)
    step = pl.program_id(1)

    @pl.when(step == 0)
    def _init():
        bl_ref[...] = jnp.zeros_like(bl_ref)
        ba_ref[...] = jnp.zeros_like(ba_ref)

    # int32 flat indices: fine for any realistic protein batch (< 2**31 elems).
    tile_idx = pl.program_id(0) * tiles_per_core + step
    tile_elem_start = tile_idx * (tile_rows * _LANES)
    fully_valid = (tile_elem_start + tile_rows * _LANES) <= total

    n_chunks = tile_rows // chunk

    def chunk_terms(off):
        def plane(k):
            return slab_ref[k, pl.ds(off, chunk), :]
        dcn = (plane(0), plane(1), plane(2))       # N(i+1) - C(i)
        b0 = (plane(3), plane(4), plane(5))        # CA(i)  - C(i)
        b2 = (plane(6), plane(7), plane(8))        # CA(i+1)- N(i+1)

        dot_dd = _vdot(dcn, dcn)
        dot_0d = _vdot(b0, dcn)
        dot_2d = _vdot(b2, dcn)
        dot_02 = _vdot(b0, b2)
        cr1 = _vcross(b0, dcn)                     # reused: angle1 + dihedral
        cr2 = _vcross(dcn, b2)
        c1sq = _vdot(cr1, cr1)
        c2sq = _vdot(cr2, cr2)
        c1b2 = _vdot(cr1, b2)                      # (b0 x dcn) . b2

        # ---- bond length: |C(i) - N(i+1)| ~ Normal(L_C_N, sigma) ----
        d = jnp.sqrt(dot_dd)
        bl_terms = half_inv_var * (d - L_C_N) ** 2

        # ---- bond angles (atan2 with y >= 0) ----
        th1 = _atan2_nonneg_y(jnp.sqrt(c1sq), dot_0d)     # CA-C-N(+1)
        th2 = _atan2_nonneg_y(jnp.sqrt(c2sq), -dot_2d)    # C-N(+1)-CA(+1)

        # ---- omega: cos(dihedral) without forming v/w or normalizing b1:
        #   x' = (b0.b2)|b1|^2 - (b0.b1)(b2.b1);  y'^2 = ((b0 x b1).b2)^2 |b1|^2
        #   -kappa*cos(om - pi) == kappa*cos(om) == kappa * x'/sqrt(x'^2+y'^2)
        xx = dot_02 * dot_dd - dot_0d * dot_2d
        yy2 = c1b2 * c1b2 * dot_dd
        den = xx * xx + yy2
        inv = lax.rsqrt(jnp.maximum(den, 1e-37))
        cos_om = jnp.where(den > 0.0, xx * inv, 1.0)   # degenerate: cos(0) = 1

        ba_terms = (half_inv_var * ((th1 - A_CA_C_N) ** 2
                                    + (th2 - A_C_N_CA) ** 2)
                    + kappa * cos_om)
        return bl_terms, ba_terms

    def fold_rows(x):
        # (chunk, 128) -> (8, 128) via static sublane-aligned slices (pure VPU adds)
        acc = x[0:8]
        for r in range(8, chunk, 8):
            acc = acc + x[r:r + 8]
        return acc

    def make_body(masked):
        def body(c, carry):
            acc_bl, acc_ba = carry
            off = pl.multiple_of(c * chunk, chunk)
            bl_terms, ba_terms = chunk_terms(off)
            if masked:
                rows = lax.broadcasted_iota(jnp.int32, (chunk, _LANES), 0)
                lanes = lax.broadcasted_iota(jnp.int32, (chunk, _LANES), 1)
                flat = tile_elem_start + (off + rows) * _LANES + lanes
                m = (flat < total).astype(jnp.float32)
                bl_terms = bl_terms * m
                ba_terms = ba_terms * m
            return acc_bl + fold_rows(bl_terms), acc_ba + fold_rows(ba_terms)
        return body

    zeros = jnp.zeros((8, _LANES), jnp.float32)

    @pl.when(fully_valid)
    def _dense():
        abl, aba = lax.fori_loop(0, n_chunks, make_body(False), (zeros, zeros))
        bl_ref[...] += abl
        ba_ref[...] += aba

    @pl.when(jnp.logical_not(fully_valid))
    def _masked():
        abl, aba = lax.fori_loop(0, n_chunks, make_body(True), (zeros, zeros))
        bl_ref[...] += abl
        ba_ref[...] += aba


# ------------------------------- wrapper -------------------------------------
@functools.partial(jax.jit, static_argnums=(3, 4, 5))
def _bond_restraint_impl(N, CA, C, sigma, gauss_const, vm_const):
    B, L, _ = N.shape
    total = B * (L - 1)
    f32 = jnp.float32

    rows = -(-total // _LANES) if total > 0 else 0
    tile_rows = min(_MAX_TILE_ROWS, max(_CHUNK, -(-rows // _CHUNK) * _CHUNK))
    slice_rows = _NUM_CORE_SLICES * tile_rows
    rows_padded = max(-(-rows // slice_rows) * slice_rows, slice_rows)
    tiles_per_core = rows_padded // slice_rows
    padded_total = rows_padded * _LANES

    # Difference vectors computed on the natural (B, L-1, 3) layout, then a
    # single pad + transpose relayout to a lane-dense (9, rows, 128) slab.
    dcn = (N[:, 1:] - C[:, :-1]).astype(f32)
    b0 = (CA[:, :-1] - C[:, :-1]).astype(f32)
    b2 = (CA[:, 1:] - N[:, 1:]).astype(f32)
    stacked = jnp.concatenate([dcn, b0, b2], axis=-1).reshape(total, 9)

    # Finite, non-degenerate pad geometry (masked out in-kernel).
    pad_vec = jnp.asarray([0., 0., 1., 1., 0., 0., 0., 1., 0.], f32)
    if padded_total > total:
        pad = jnp.broadcast_to(pad_vec, (padded_total - total, 9))
        stacked = jnp.concatenate([stacked, pad], axis=0)
    slab = stacked.T.reshape(9, rows_padded, _LANES)

    kappa = 1.0 / (sigma * sigma)
    kernel = functools.partial(
        _bond_restraint_kernel,
        half_inv_var=0.5 * kappa, kappa=kappa, total=total,
        tiles_per_core=tiles_per_core, tile_rows=tile_rows, chunk=_CHUNK)

    bl_acc, ba_acc = pl.pallas_call(
        kernel,
        out_shape=(jax.ShapeDtypeStruct((_NUM_CORE_SLICES * 8, _LANES), f32),
                   jax.ShapeDtypeStruct((_NUM_CORE_SLICES * 8, _LANES), f32)),
        grid_spec=pltpu.PrefetchScalarGridSpec(
            num_scalar_prefetch=0,
            grid=(_NUM_CORE_SLICES, tiles_per_core),
            in_specs=[pl.BlockSpec(
                (9, tile_rows, _LANES),
                lambda c, i: (0, c * tiles_per_core + i, 0))],
            out_specs=(pl.BlockSpec((8, _LANES), lambda c, i: (c, 0)),
                       pl.BlockSpec((8, _LANES), lambda c, i: (c, 0))),
        ),
        compiler_params=pltpu.CompilerParams(
            dimension_semantics=("parallel", "arbitrary"),
            vmem_limit_bytes=48 * 1024 * 1024),
    )(slab)

    # Shape-independent normalizer constants added once, host-computed.
    n = float(total)
    bl = jnp.sum(bl_acc) + n * gauss_const
    ba = jnp.sum(ba_acc) + n * (2.0 * gauss_const + vm_const)
    return {'bond_length': bl, 'bond_angle': ba}


def bond_restraint(N, CA, C, sigma=SIGMA):
    """N, CA, C: (B, L, 3) float32 backbone coordinates."""
    kappa = 1.0 / (sigma * sigma)
    # log I0(kappa) for the von Mises normalizer (scalar, host-side).
    log_i0 = float(jnp.log(i0e(jnp.float32(kappa))) + kappa)
    gauss_const = math.log(sigma) + 0.5 * math.log(2.0 * math.pi)
    vm_const = math.log(2.0 * math.pi) + log_i0
    return _bond_restraint_impl(N, CA, C, float(sigma), gauss_const, vm_const)


# ------------------------- pure-JAX reference (check) ------------------------
def _reference(N, CA, C, sigma=SIGMA):
    kappa = 1.0 / (sigma * sigma)
    log_i0 = float(jnp.log(i0e(jnp.float32(kappa))) + kappa)

    def gauss_loss(x, mean):
        return jnp.sum(0.5 * ((x - mean) / sigma) ** 2
                       + math.log(sigma) + 0.5 * math.log(2 * math.pi))

    def vm_loss(x, mean):
        return jnp.sum(-kappa * jnp.cos(x - mean)
                       + math.log(2 * math.pi) + log_i0)

    Cp, Ap = C[:, :-1], CA[:, :-1]
    Nn, An = N[:, 1:], CA[:, 1:]
    norm = lambda v: jnp.linalg.norm(v, axis=-1)

    def angle(a, b, c):
        u, v = a - b, c - b
        return jnp.arctan2(norm(jnp.cross(u, v)), jnp.sum(u * v, -1))

    def dihedral(p0, p1, p2, p3):
        b0, b1, b2 = p0 - p1, p2 - p1, p3 - p2
        b1u = b1 / norm(b1)[..., None]
        v = b0 - jnp.sum(b0 * b1u, -1, keepdims=True) * b1u
        w = b2 - jnp.sum(b2 * b1u, -1, keepdims=True) * b1u
        return jnp.arctan2(jnp.sum(jnp.cross(b1u, v) * w, -1), jnp.sum(v * w, -1))

    bl = gauss_loss(norm(Nn - Cp), L_C_N)
    ba = (gauss_loss(angle(Ap, Cp, Nn), A_CA_C_N)
          + gauss_loss(angle(Cp, Nn, An), A_C_N_CA)
          + vm_loss(dihedral(Ap, Cp, Nn, An), OMEGA))
    return {'bond_length': bl, 'bond_angle': ba}


if __name__ == "__main__":
    key = jax.random.PRNGKey(0)
    B, L = 2, 16
    k1, k2, k3, k4 = jax.random.split(key, 4)
    # Chain-like random coordinates so bond vectors are O(1) and non-degenerate.
    base = jnp.cumsum(jax.random.normal(k1, (B, L, 3), dtype=jnp.float32), axis=1)
    N  = base + 0.3 * jax.random.normal(k2, (B, L, 3), dtype=jnp.float32)
    CA = base + 0.3 * jax.random.normal(k3, (B, L, 3), dtype=jnp.float32)
    C  = base + 0.3 * jax.random.normal(k4, (B, L, 3), dtype=jnp.float32)

    out = bond_restraint(N, CA, C, SIGMA)
    jax.block_until_ready(out)

    ref = _reference(N, CA, C, SIGMA)
    for k in ('bond_length', 'bond_angle'):
        a, b = float(out[k]), float(ref[k])
        assert abs(a - b) <= 1e-3 * max(1.0, abs(b)), (k, a, b)

    print("KERNEL_OK")
</pallas_src>

<mosaic_0001>
module attributes {stable_mosaic.version = 11 : i64} {
  func.func @_bond_restraint_kernel(%arg0: i32, %arg1: i32, %arg2: memref<9x32x128xf32, #tpu.memory_space<vmem>>, %arg3: memref<8x128xf32, #tpu.memory_space<vmem>>, %arg4: memref<8x128xf32, #tpu.memory_space<vmem>>) attributes {dimension_semantics = [#tpu.dimension_semantics<parallel>, #tpu.dimension_semantics<arbitrary>], iteration_bounds = array<i64: 2, 1>, scalar_prefetch = 0 : i64, scratch_operands = 0 : i64, tpu.core_type = #tpu.core_type<tc>, window_params = [{transform_indices = @transform_0, window_bounds = array<i64: 9, 32, 128>}, {transform_indices = @transform_1, window_bounds = array<i64: 8, 128>}, {transform_indices = @transform_2, window_bounds = array<i64: 8, 128>}]} {
    %c0_i32 = arith.constant 0 : i32
    %0 = arith.cmpi eq, %arg1, %c0_i32 : i32
    %1 = arith.extui %0 : i1 to i32
    %c0_i32_0 = arith.constant 0 : i32
    %2 = arith.cmpi ne, %1, %c0_i32_0 : i32
    scf.if %2 {
      %cst_4 = arith.constant 0.000000e+00 : f32
      %14 = vector.broadcast %cst_4 : f32 to vector<8x128xf32>
      %c0 = arith.constant 0 : index
      %c0_5 = arith.constant 0 : index
      %15 = vector.load %arg3[%c0, %c0_5] : memref<8x128xf32, #tpu.memory_space<vmem>>, vector<8x128xf32>
      tpu.vector_store %arg3[%c0, %c0_5], %14 {strides = array<i32>} : memref<8x128xf32, #tpu.memory_space<vmem>>, vector<8x128xf32>,
      %cst_6 = arith.constant 0.000000e+00 : f32
      %16 = vector.broadcast %cst_6 : f32 to vector<8x128xf32>
      %c0_7 = arith.constant 0 : index
      %c0_8 = arith.constant 0 : index
      %17 = vector.load %arg4[%c0_7, %c0_8] : memref<8x128xf32, #tpu.memory_space<vmem>>, vector<8x128xf32>
      tpu.vector_store %arg4[%c0_7, %c0_8], %16 {strides = array<i32>} : memref<8x128xf32, #tpu.memory_space<vmem>>, vector<8x128xf32>,
    } else {
    }
    %c1_i32 = arith.constant 1 : i32
    %3 = arith.muli %arg0, %c1_i32 : i32
    %4 = arith.addi %3, %arg1 : i32
    %c4096_i32 = arith.constant 4096 : i32
    %5 = arith.muli %4, %c4096_i32 : i32
    %c4096_i32_1 = arith.constant 4096 : i32
    %6 = arith.addi %5, %c4096_i32_1 : i32
    %c30_i32 = arith.constant 30 : i32
    %7 = arith.cmpi sle, %6, %c30_i32 : i32
    %cst = arith.constant 0.000000e+00 : f32
    %8 = vector.broadcast %cst : f32 to vector<8x128xf32>
    %9 = arith.extui %7 : i1 to i32
    %c0_i32_2 = arith.constant 0 : i32
    %10 = arith.cmpi ne, %9, %c0_i32_2 : i32
    scf.if %10 {
      %c0_i32_4 = arith.constant 0 : i32
      %c32_i32 = arith.constant 32 : i32
      %14 = arith.muli %c0_i32_4, %c32_i32 : i32
      %15 = tpu.assume_multiple %14, 32 : i32
      %c0 = arith.constant 0 : index
      %16 = arith.index_cast %15 : i32 to index
      %c0_5 = arith.constant 0 : index
      %17 = vector.load %arg2[%c0, %16, %c0_5] : memref<9x32x128xf32, #tpu.memory_space<vmem>>, vector<1x32x128xf32>
      %18 = vector.shape_cast %17 : vector<1x32x128xf32> to vector<32x128xf32>
      %c1 = arith.constant 1 : index
      %19 = arith.index_cast %15 : i32 to index
      %c0_6 = arith.constant 0 : index
      %20 = vector.load %arg2[%c1, %19, %c0_6] : memref<9x32x128xf32, #tpu.memory_space<vmem>>, vector<1x32x128xf32>
      %21 = vector.shape_cast %20 : vector<1x32x128xf32> to vector<32x128xf32>
      %c2 = arith.constant 2 : index
      %22 = arith.index_cast %15 : i32 to index
      %c0_7 = arith.constant 0 : index
      %23 = vector.load %arg2[%c2, %22, %c0_7] : memref<9x32x128xf32, #tpu.memory_space<vmem>>, vector<1x32x128xf32>
      %24 = vector.shape_cast %23 : vector<1x32x128xf32> to vector<32x128xf32>
      %c3 = arith.constant 3 : index
      %25 = arith.index_cast %15 : i32 to index
      %c0_8 = arith.constant 0 : index
      %26 = vector.load %arg2[%c3, %25, %c0_8] : memref<9x32x128xf32, #tpu.memory_space<vmem>>, vector<1x32x128xf32>
      %27 = vector.shape_cast %26 : vector<1x32x128xf32> to vector<32x128xf32>
      %c4 = arith.constant 4 : index
      %28 = arith.index_cast %15 : i32 to index
      %c0_9 = arith.constant 0 : index
      %29 = vector.load %arg2[%c4, %28, %c0_9] : memref<9x32x128xf32, #tpu.memory_space<vmem>>, vector<1x32x128xf32>
      %30 = vector.shape_cast %29 : vector<1x32x128xf32> to vector<32x128xf32>
      %c5 = arith.constant 5 : index
      %31 = arith.index_cast %15 : i32 to index
      %c0_10 = arith.constant 0 : index
      %32 = vector.load %arg2[%c5, %31, %c0_10] : memref<9x32x128xf32, #tpu.memory_space<vmem>>, vector<1x32x128xf32>
      %33 = vector.shape_cast %32 : vector<1x32x128xf32> to vector<32x128xf32>
      %c6 = arith.constant 6 : index
      %34 = arith.index_cast %15 : i32 to index
      %c0_11 = arith.constant 0 : index
      %35 = vector.load %arg2[%c6, %34, %c0_11] : memref<9x32x128xf32, #tpu.memory_space<vmem>>, vector<1x32x128xf32>
      %36 = vector.shape_cast %35 : vector<1x32x128xf32> to vector<32x128xf32>
      %c7 = arith.constant 7 : index
      %37 = arith.index_cast %15 : i32 to index
      %c0_12 = arith.constant 0 : index
      %38 = vector.load %arg2[%c7, %37, %c0_12] : memref<9x32x128xf32, #tpu.memory_space<vmem>>, vector<1x32x128xf32>
      %39 = vector.shape_cast %38 : vector<1x32x128xf32> to vector<32x128xf32>
      %c8 = arith.constant 8 : index
      %40 = arith.index_cast %15 : i32 to index
      %c0_13 = arith.constant 0 : index
      %41 = vector.load %arg2[%c8, %40, %c0_13] : memref<9x32x128xf32, #tpu.memory_space<vmem>>, vector<1x32x128xf32>
      %42 = vector.shape_cast %41 : vector<1x32x128xf32> to vector<32x128xf32>
      %43 = arith.mulf %18, %18 : vector<32x128xf32>
      %44 = arith.mulf %21, %21 : vector<32x128xf32>
      %45 = arith.addf %43, %44 : vector<32x128xf32>
      %46 = arith.mulf %24, %24 : vector<32x128xf32>
      %47 = arith.addf %45, %46 : vector<32x128xf32>
      %48 = arith.mulf %27, %18 : vector<32x128xf32>
      %49 = arith.mulf %30, %21 : vector<32x128xf32>
      %50 = arith.addf %48, %49 : vector<32x128xf32>
      %51 = arith.mulf %33, %24 : vector<32x128xf32>
      %52 = arith.addf %50, %51 : vector<32x128xf32>
      %53 = arith.mulf %36, %18 : vector<32x128xf32>
      %54 = arith.mulf %39, %21 : vector<32x128xf32>
      %55 = arith.addf %53, %54 : vector<32x128xf32>
      %56 = arith.mulf %42, %24 : vector<32x128xf32>
      %57 = arith.addf %55, %56 : vector<32x128xf32>
      %58 = arith.mulf %27, %36 : vector<32x128xf32>
      %59 = arith.mulf %30, %39 : vector<32x128xf32>
      %60 = arith.addf %58, %59 : vector<32x128xf32>
      %61 = arith.mulf %33, %42 : vector<32x128xf32>
      %62 = arith.addf %60, %61 : vector<32x128xf32>
      %63 = arith.mulf %30, %24 : vector<32x128xf32>
      %64 = arith.mulf %33, %21 : vector<32x128xf32>
      %65 = arith.subf %63, %64 : vector<32x128xf32>
      %66 = arith.mulf %33, %18 : vector<32x128xf32>
      %67 = arith.mulf %27, %24 : vector<32x128xf32>
      %68 = arith.subf %66, %67 : vector<32x128xf32>
      %69 = arith.mulf %27, %21 : vector<32x128xf32>
      %70 = arith.mulf %30, %18 : vector<32x128xf32>
      %71 = arith.subf %69, %70 : vector<32x128xf32>
      %72 = arith.mulf %21, %42 : vector<32x128xf32>
      %73 = arith.mulf %24, %39 : vector<32x128xf32>
      %74 = arith.subf %72, %73 : vector<32x128xf32>
      %75 = arith.mulf %24, %36 : vector<32x128xf32>
      %76 = arith.mulf %18, %42 : vector<32x128xf32>
      %77 = arith.subf %75, %76 : vector<32x128xf32>
      %78 = arith.mulf %18, %39 : vector<32x128xf32>
      %79 = arith.mulf %21, %36 : vector<32x128xf32>
      %80 = arith.subf %78, %79 : vector<32x128xf32>
      %81 = arith.mulf %65, %65 : vector<32x128xf32>
      %82 = arith.mulf %68, %68 : vector<32x128xf32>
      %83 = arith.addf %81, %82 : vector<32x128xf32>
      %84 = arith.mulf %71, %71 : vector<32x128xf32>
      %85 = arith.addf %83, %84 : vector<32x128xf32>
      %86 = arith.mulf %74, %74 : vector<32x128xf32>
      %87 = arith.mulf %77, %77 : vector<32x128xf32>
      %88 = arith.addf %86, %87 : vector<32x128xf32>
      %89 = arith.mulf %80, %80 : vector<32x128xf32>
      %90 = arith.addf %88, %89 : vector<32x128xf32>
      %91 = arith.mulf %65, %36 : vector<32x128xf32>
      %92 = arith.mulf %68, %39 : vector<32x128xf32>
      %93 = arith.addf %91, %92 : vector<32x128xf32>
      %94 = arith.mulf %71, %42 : vector<32x128xf32>
      %95 = arith.addf %93, %94 : vector<32x128xf32>
      %96 = math.sqrt %47 : vector<32x128xf32>
      %cst_14 = arith.constant 1.329000e+00 : f32
      %97 = vector.broadcast %cst_14 : f32 to vector<32x128xf32>
      %98 = arith.subf %96, %97 : vector<32x128xf32>
      %99 = arith.mulf %98, %98 : vector<32x128xf32>
      %cst_15 = arith.constant 5.000000e+01 : f32
      %100 = vector.broadcast %cst_15 : f32 to vector<32x128xf32>
      %101 = arith.mulf %100, %99 : vector<32x128xf32>
      %102 = math.sqrt %85 : vector<32x128xf32>
      %103 = math.absf %52 : vector<32x128xf32>
      %104 = arith.minimumf %102, %103 : vector<32x128xf32>
      %105 = arith.maximumf %102, %103 : vector<32x128xf32>
      %cst_16 = arith.constant 9.99999991E-38 : f32
      %106 = vector.broadcast %cst_16 : f32 to vector<32x128xf32>
      %107 = arith.maximumf %105, %106 : vector<32x128xf32>
      %108 = tpu.reciprocal %107 {approx = true} : vector<32x128xf32> -> vector<32x128xf32>
      %109 = arith.mulf %107, %108 : vector<32x128xf32>
      %cst_17 = arith.constant 2.000000e+00 : f32
      %110 = vector.broadcast %cst_17 : f32 to vector<32x128xf32>
      %111 = arith.subf %110, %109 : vector<32x128xf32>
      %112 = arith.mulf %108, %111 : vector<32x128xf32>
      %113 = arith.mulf %104, %112 : vector<32x128xf32>
      %cst_18 = arith.constant 0.414213568 : f32
      %114 = vector.broadcast %cst_18 : f32 to vector<32x128xf32>
      %115 = arith.cmpf ogt, %113, %114 : vector<32x128xf32>
      %cst_19 = arith.constant 1.000000e+00 : f32
      %116 = vector.broadcast %cst_19 : f32 to vector<32x128xf32>
      %117 = arith.subf %113, %116 : vector<32x128xf32>
      %118 = arith.select %115, %117, %113 : vector<32x128xi1>, vector<32x128xf32>
      %cst_20 = arith.constant 1.000000e+00 : f32
      %119 = vector.broadcast %cst_20 : f32 to vector<32x128xf32>
      %120 = arith.addf %113, %119 : vector<32x128xf32>
      %cst_21 = arith.constant 1.000000e+00 : f32
      %121 = vector.broadcast %cst_21 : f32 to vector<32x128xf32>
      %122 = arith.select %115, %120, %121 : vector<32x128xi1>, vector<32x128xf32>
      %123 = tpu.reciprocal %122 {approx = true} : vector<32x128xf32> -> vector<32x128xf32>
      %124 = arith.mulf %122, %123 : vector<32x128xf32>
      %cst_22 = arith.constant 2.000000e+00 : f32
      %125 = vector.broadcast %cst_22 : f32 to vector<32x128xf32>
      %126 = arith.subf %125, %124 : vector<32x128xf32>
      %127 = arith.mulf %123, %126 : vector<32x128xf32>
      %128 = arith.mulf %118, %127 : vector<32x128xf32>
      %cst_23 = arith.constant 0.785398185 : f32
      %cst_24 = arith.constant 0.000000e+00 : f32
      %129 = vector.broadcast %cst_23 : f32 to vector<32x128xf32>
      %130 = vector.broadcast %cst_24 : f32 to vector<32x128xf32>
      %131 = arith.select %115, %129, %130 : vector<32x128xi1>, vector<32x128xf32>
      %132 = arith.mulf %128, %128 : vector<32x128xf32>
      %cst_25 = arith.constant 0.0805374458 : f32
      %133 = vector.broadcast %cst_25 : f32 to vector<32x128xf32>
      %134 = arith.mulf %133, %132 : vector<32x128xf32>
      %cst_26 = arith.constant 0.138776854 : f32
      %135 = vector.broadcast %cst_26 : f32 to vector<32x128xf32>
      %136 = arith.subf %134, %135 : vector<32x128xf32>
      %137 = arith.mulf %136, %132 : vector<32x128xf32>
      %cst_27 = arith.constant 0.199777111 : f32
      %138 = vector.broadcast %cst_27 : f32 to vector<32x128xf32>
      %139 = arith.addf %137, %138 : vector<32x128xf32>
      %140 = arith.mulf %139, %132 : vector<32x128xf32>
      %cst_28 = arith.constant 0.333329499 : f32
      %141 = vector.broadcast %cst_28 : f32 to vector<32x128xf32>
      %142 = arith.subf %140, %141 : vector<32x128xf32>
      %143 = arith.addf %131, %128 : vector<32x128xf32>
      %144 = arith.mulf %128, %132 : vector<32x128xf32>
      %145 = arith.mulf %144, %142 : vector<32x128xf32>
      %146 = arith.addf %143, %145 : vector<32x128xf32>
      %147 = arith.cmpf ogt, %102, %103 : vector<32x128xf32>
      %cst_29 = arith.constant 1.57079637 : f32
      %148 = vector.broadcast %cst_29 : f32 to vector<32x128xf32>
      %149 = arith.subf %148, %146 : vector<32x128xf32>
      %150 = arith.select %147, %149, %146 : vector<32x128xi1>, vector<32x128xf32>
      %cst_30 = arith.constant 0.000000e+00 : f32
      %151 = vector.broadcast %cst_30 : f32 to vector<32x128xf32>
      %152 = arith.cmpf olt, %52, %151 : vector<32x128xf32>
      %cst_31 = arith.constant 3.14159274 : f32
      %153 = vector.broadcast %cst_31 : f32 to vector<32x128xf32>
      %154 = arith.subf %153, %150 : vector<32x128xf32>
      %155 = arith.select %152, %154, %150 : vector<32x128xi1>, vector<32x128xf32>
      %156 = math.sqrt %90 : vector<32x128xf32>
      %cst_32 = arith.constant 0.000000e+00 : f32
      %157 = vector.broadcast %cst_32 : f32 to vector<32x128xf32>
      %158 = arith.subf %157, %57 : vector<32x128xf32>
      %159 = math.absf %158 : vector<32x128xf32>
      %160 = arith.minimumf %156, %159 : vector<32x128xf32>
      %161 = arith.maximumf %156, %159 : vector<32x128xf32>
      %cst_33 = arith.constant 9.99999991E-38 : f32
      %162 = vector.broadcast %cst_33 : f32 to vector<32x128xf32>
      %163 = arith.maximumf %161, %162 : vector<32x128xf32>
      %164 = tpu.reciprocal %163 {approx = true} : vector<32x128xf32> -> vector<32x128xf32>
      %165 = arith.mulf %163, %164 : vector<32x128xf32>
      %cst_34 = arith.constant 2.000000e+00 : f32
      %166 = vector.broadcast %cst_34 : f32 to vector<32x128xf32>
      %167 = arith.subf %166, %165 : vector<32x128xf32>
      %168 = arith.mulf %164, %167 : vector<32x128xf32>
      %169 = arith.mulf %160, %168 : vector<32x128xf32>
      %cst_35 = arith.constant 0.414213568 : f32
      %170 = vector.broadcast %cst_35 : f32 to vector<32x128xf32>
      %171 = arith.cmpf ogt, %169, %170 : vector<32x128xf32>
      %cst_36 = arith.constant 1.000000e+00 : f32
      %172 = vector.broadcast %cst_36 : f32 to vector<32x128xf32>
      %173 = arith.subf %169, %172 : vector<32x128xf32>
      %174 = arith.select %171, %173, %169 : vector<32x128xi1>, vector<32x128xf32>
      %cst_37 = arith.constant 1.000000e+00 : f32
      %175 = vector.broadcast %cst_37 : f32 to vector<32x128xf32>
      %176 = arith.addf %169, %175 : vector<32x128xf32>
      %cst_38 = arith.constant 1.000000e+00 : f32
      %177 = vector.broadcast %cst_38 : f32 to vector<32x128xf32>
      %178 = arith.select %171, %176, %177 : vector<32x128xi1>, vector<32x128xf32>
      %179 = tpu.reciprocal %178 {approx = true} : vector<32x128xf32> -> vector<32x128xf32>
      %180 = arith.mulf %178, %179 : vector<32x128xf32>
      %cst_39 = arith.constant 2.000000e+00 : f32
      %181 = vector.broadcast %cst_39 : f32 to vector<32x128xf32>
      %182 = arith.subf %181, %180 : vector<32x128xf32>
      %183 = arith.mulf %179, %182 : vector<32x128xf32>
      %184 = arith.mulf %174, %183 : vector<32x128xf32>
      %cst_40 = arith.constant 0.785398185 : f32
      %cst_41 = arith.constant 0.000000e+00 : f32
      %185 = vector.broadcast %cst_40 : f32 to vector<32x128xf32>
      %186 = vector.broadcast %cst_41 : f32 to vector<32x128xf32>
      %187 = arith.select %171, %185, %186 : vector<32x128xi1>, vector<32x128xf32>
      %188 = arith.mulf %184, %184 : vector<32x128xf32>
      %cst_42 = arith.constant 0.0805374458 : f32
      %189 = vector.broadcast %cst_42 : f32 to vector<32x128xf32>
      %190 = arith.mulf %189, %188 : vector<32x128xf32>
      %cst_43 = arith.constant 0.138776854 : f32
      %191 = vector.broadcast %cst_43 : f32 to vector<32x128xf32>
      %192 = arith.subf %190, %191 : vector<32x128xf32>
      %193 = arith.mulf %192, %188 : vector<32x128xf32>
      %cst_44 = arith.constant 0.199777111 : f32
      %194 = vector.broadcast %cst_44 : f32 to vector<32x128xf32>
      %195 = arith.addf %193, %194 : vector<32x128xf32>
      %196 = arith.mulf %195, %188 : vector<32x128xf32>
      %cst_45 = arith.constant 0.333329499 : f32
      %197 = vector.broadcast %cst_45 : f32 to vector<32x128xf32>
      %198 = arith.subf %196, %197 : vector<32x128xf32>
      %199 = arith.addf %187, %184 : vector<32x128xf32>
      %200 = arith.mulf %184, %188 : vector<32x128xf32>
      %201 = arith.mulf %200, %198 : vector<32x128xf32>
      %202 = arith.addf %199, %201 : vector<32x128xf32>
      %203 = arith.cmpf ogt, %156, %159 : vector<32x128xf32>
      %cst_46 = arith.constant 1.57079637 : f32
      %204 = vector.broadcast %cst_46 : f32 to vector<32x128xf32>
      %205 = arith.subf %204, %202 : vector<32x128xf32>
      %206 = arith.select %203, %205, %202 : vector<32x128xi1>, vector<32x128xf32>
      %cst_47 = arith.constant 0.000000e+00 : f32
      %207 = vector.broadcast %cst_47 : f32 to vector<32x128xf32>
      %208 = arith.cmpf olt, %158, %207 : vector<32x128xf32>
      %cst_48 = arith.constant 3.14159274 : f32
      %209 = vector.broadcast %cst_48 : f32 to vector<32x128xf32>
      %210 = arith.subf %209, %206 : vector<32x128xf32>
      %211 = arith.select %208, %210, %206 : vector<32x128xi1>, vector<32x128xf32>
      %212 = arith.mulf %62, %47 : vector<32x128xf32>
      %213 = arith.mulf %52, %57 : vector<32x128xf32>
      %214 = arith.subf %212, %213 : vector<32x128xf32>
      %215 = arith.mulf %95, %95 : vector<32x128xf32>
      %216 = arith.mulf %215, %47 : vector<32x128xf32>
      %217 = arith.mulf %214, %214 : vector<32x128xf32>
      %218 = arith.addf %217, %216 : vector<32x128xf32>
      %cst_49 = arith.constant 9.99999991E-38 : f32
      %219 = vector.broadcast %cst_49 : f32 to vector<32x128xf32>
      %220 = arith.maximumf %218, %219 : vector<32x128xf32>
      %221 = math.rsqrt %220 : vector<32x128xf32>
      %cst_50 = arith.constant 0.000000e+00 : f32
      %222 = vector.broadcast %cst_50 : f32 to vector<32x128xf32>
      %223 = arith.cmpf ogt, %218, %222 : vector<32x128xf32>
      %224 = arith.mulf %214, %221 : vector<32x128xf32>
      %cst_51 = arith.constant 1.000000e+00 : f32
      %225 = vector.broadcast %cst_51 : f32 to vector<32x128xf32>
      %226 = arith.select %223, %224, %225 : vector<32x128xi1>, vector<32x128xf32>
      %cst_52 = arith.constant 2.0280726 : f32
      %227 = vector.broadcast %cst_52 : f32 to vector<32x128xf32>
      %228 = arith.subf %155, %227 : vector<32x128xf32>
      %229 = arith.mulf %228, %228 : vector<32x128xf32>
      %cst_53 = arith.constant 2.12406564 : f32
      %230 = vector.broadcast %cst_53 : f32 to vector<32x128xf32>
      %231 = arith.subf %211, %230 : vector<32x128xf32>
      %232 = arith.mulf %231, %231 : vector<32x128xf32>
      %233 = arith.addf %229, %232 : vector<32x128xf32>
      %cst_54 = arith.constant 5.000000e+01 : f32
      %234 = vector.broadcast %cst_54 : f32 to vector<32x128xf32>
      %235 = arith.mulf %234, %233 : vector<32x128xf32>
      %cst_55 = arith.constant 1.000000e+02 : f32
      %236 = vector.broadcast %cst_55 : f32 to vector<32x128xf32>
      %237 = arith.mulf %236, %226 : vector<32x128xf32>
      %238 = arith.addf %235, %237 : vector<32x128xf32>
      %239 = vector.extract_strided_slice %101 {offsets = [0, 0], sizes = [8, 128], strides = [1, 1]} : vector<32x128xf32> to vector<8x128xf32>
      %240 = vector.extract_strided_slice %101 {offsets = [8, 0], sizes = [8, 128], strides = [1, 1]} : vector<32x128xf32> to vector<8x128xf32>
      %241 = arith.addf %239, %240 : vector<8x128xf32>
      %242 = vector.extract_strided_slice %101 {offsets = [16, 0], sizes = [8, 128], strides = [1, 1]} : vector<32x128xf32> to vector<8x128xf32>
      %243 = arith.addf %241, %242 : vector<8x128xf32>
      %244 = vector.extract_strided_slice %101 {offsets = [24, 0], sizes = [8, 128], strides = [1, 1]} : vector<32x128xf32> to vector<8x128xf32>
      %245 = arith.addf %243, %244 : vector<8x128xf32>
      %246 = arith.addf %8, %245 : vector<8x128xf32>
      %247 = vector.extract_strided_slice %238 {offsets = [0, 0], sizes = [8, 128], strides = [1, 1]} : vector<32x128xf32> to vector<8x128xf32>
      %248 = vector.extract_strided_slice %238 {offsets = [8, 0], sizes = [8, 128], strides = [1, 1]} : vector<32x128xf32> to vector<8x128xf32>
      %249 = arith.addf %247, %248 : vector<8x128xf32>
      %250 = vector.extract_strided_slice %238 {offsets = [16, 0], sizes = [8, 128], strides = [1, 1]} : vector<32x128xf32> to vector<8x128xf32>
      %251 = arith.addf %249, %250 : vector<8x128xf32>
      %252 = vector.extract_strided_slice %238 {offsets = [24, 0], sizes = [8, 128], strides = [1, 1]} : vector<32x128xf32> to vector<8x128xf32>
      %253 = arith.addf %251, %252 : vector<8x128xf32>
      %254 = arith.addf %8, %253 : vector<8x128xf32>
      %c1_i32_56 = arith.constant 1 : i32
      %c0_57 = arith.constant 0 : index
      %c0_58 = arith.constant 0 : index
      %255 = vector.load %arg3[%c0_57, %c0_58] : memref<8x128xf32, #tpu.memory_space<vmem>>, vector<8x128xf32>
      %256 = arith.addf %255, %246 : vector<8x128xf32>
      %c0_59 = arith.constant 0 : index
      %c0_60 = arith.constant 0 : index
      %257 = vector.load %arg3[%c0_59, %c0_60] : memref<8x128xf32, #tpu.memory_space<vmem>>, vector<8x128xf32>
      tpu.vector_store %arg3[%c0_59, %c0_60], %256 {strides = array<i32>} : memref<8x128xf32, #tpu.memory_space<vmem>>, vector<8x128xf32>,
      %c0_61 = arith.constant 0 : index
      %c0_62 = arith.constant 0 : index
      %258 = vector.load %arg4[%c0_61, %c0_62] : memref<8x128xf32, #tpu.memory_space<vmem>>, vector<8x128xf32>
      %259 = arith.addf %258, %254 : vector<8x128xf32>
      %c0_63 = arith.constant 0 : index
      %c0_64 = arith.constant 0 : index
      %260 = vector.load %arg4[%c0_63, %c0_64] : memref<8x128xf32, #tpu.memory_space<vmem>>, vector<8x128xf32>
      tpu.vector_store %arg4[%c0_63, %c0_64], %259 {strides = array<i32>} : memref<8x128xf32, #tpu.memory_space<vmem>>, vector<8x128xf32>,
    } else {
    }
    %true = arith.constant true
    %11 = arith.xori %7, %true : i1
    %12 = arith.extui %11 : i1 to i32
    %c0_i32_3 = arith.constant 0 : i32
    %13 = arith.cmpi ne, %12, %c0_i32_3 : i32
    scf.if %13 {
      %c0_i32_4 = arith.constant 0 : i32
      %c32_i32 = arith.constant 32 : i32
      %14 = arith.muli %c0_i32_4, %c32_i32 : i32
      %15 = tpu.assume_multiple %14, 32 : i32
      %c0 = arith.constant 0 : index
      %16 = arith.index_cast %15 : i32 to index
      %c0_5 = arith.constant 0 : index
      %17 = vector.load %arg2[%c0, %16, %c0_5] : memref<9x32x128xf32, #tpu.memory_space<vmem>>, vector<1x32x128xf32>
      %18 = vector.shape_cast %17 : vector<1x32x128xf32> to vector<32x128xf32>
      %c1 = arith.constant 1 : index
      %19 = arith.index_cast %15 : i32 to index
      %c0_6 = arith.constant 0 : index
      %20 = vector.load %arg2[%c1, %19, %c0_6] : memref<9x32x128xf32, #tpu.memory_space<vmem>>, vector<1x32x128xf32>
      %21 = vector.shape_cast %20 : vector<1x32x128xf32> to vector<32x128xf32>
      %c2 = arith.constant 2 : index
      %22 = arith.index_cast %15 : i32 to index
      %c0_7 = arith.constant 0 : index
      %23 = vector.load %arg2[%c2, %22, %c0_7] : memref<9x32x128xf32, #tpu.memory_space<vmem>>, vector<1x32x128xf32>
      %24 = vector.shape_cast %23 : vector<1x32x128xf32> to vector<32x128xf32>
      %c3 = arith.constant 3 : index
      %25 = arith.index_cast %15 : i32 to index
      %c0_8 = arith.constant 0 : index
      %26 = vector.load %arg2[%c3, %25, %c0_8] : memref<9x32x128xf32, #tpu.memory_space<vmem>>, vector<1x32x128xf32>
      %27 = vector.shape_cast %26 : vector<1x32x128xf32> to vector<32x128xf32>
      %c4 = arith.constant 4 : index
      %28 = arith.index_cast %15 : i32 to index
      %c0_9 = arith.constant 0 : index
      %29 = vector.load %arg2[%c4, %28, %c0_9] : memref<9x32x128xf32, #tpu.memory_space<vmem>>, vector<1x32x128xf32>
      %30 = vector.shape_cast %29 : vector<1x32x128xf32> to vector<32x128xf32>
      %c5 = arith.constant 5 : index
      %31 = arith.index_cast %15 : i32 to index
      %c0_10 = arith.constant 0 : index
      %32 = vector.load %arg2[%c5, %31, %c0_10] : memref<9x32x128xf32, #tpu.memory_space<vmem>>, vector<1x32x128xf32>
      %33 = vector.shape_cast %32 : vector<1x32x128xf32> to vector<32x128xf32>
      %c6 = arith.constant 6 : index
      %34 = arith.index_cast %15 : i32 to index
      %c0_11 = arith.constant 0 : index
      %35 = vector.load %arg2[%c6, %34, %c0_11] : memref<9x32x128xf32, #tpu.memory_space<vmem>>, vector<1x32x128xf32>
      %36 = vector.shape_cast %35 : vector<1x32x128xf32> to vector<32x128xf32>
      %c7 = arith.constant 7 : index
      %37 = arith.index_cast %15 : i32 to index
      %c0_12 = arith.constant 0 : index
      %38 = vector.load %arg2[%c7, %37, %c0_12] : memref<9x32x128xf32, #tpu.memory_space<vmem>>, vector<1x32x128xf32>
      %39 = vector.shape_cast %38 : vector<1x32x128xf32> to vector<32x128xf32>
      %c8 = arith.constant 8 : index
      %40 = arith.index_cast %15 : i32 to index
      %c0_13 = arith.constant 0 : index
      %41 = vector.load %arg2[%c8, %40, %c0_13] : memref<9x32x128xf32, #tpu.memory_space<vmem>>, vector<1x32x128xf32>
      %42 = vector.shape_cast %41 : vector<1x32x128xf32> to vector<32x128xf32>
      %43 = arith.mulf %18, %18 : vector<32x128xf32>
      %44 = arith.mulf %21, %21 : vector<32x128xf32>
      %45 = arith.addf %43, %44 : vector<32x128xf32>
      %46 = arith.mulf %24, %24 : vector<32x128xf32>
      %47 = arith.addf %45, %46 : vector<32x128xf32>
      %48 = arith.mulf %27, %18 : vector<32x128xf32>
      %49 = arith.mulf %30, %21 : vector<32x128xf32>
      %50 = arith.addf %48, %49 : vector<32x128xf32>
      %51 = arith.mulf %33, %24 : vector<32x128xf32>
      %52 = arith.addf %50, %51 : vector<32x128xf32>
      %53 = arith.mulf %36, %18 : vector<32x128xf32>
      %54 = arith.mulf %39, %21 : vector<32x128xf32>
      %55 = arith.addf %53, %54 : vector<32x128xf32>
      %56 = arith.mulf %42, %24 : vector<32x128xf32>
      %57 = arith.addf %55, %56 : vector<32x128xf32>
      %58 = arith.mulf %27, %36 : vector<32x128xf32>
      %59 = arith.mulf %30, %39 : vector<32x128xf32>
      %60 = arith.addf %58, %59 : vector<32x128xf32>
      %61 = arith.mulf %33, %42 : vector<32x128xf32>
      %62 = arith.addf %60, %61 : vector<32x128xf32>
      %63 = arith.mulf %30, %24 : vector<32x128xf32>
      %64 = arith.mulf %33, %21 : vector<32x128xf32>
      %65 = arith.subf %63, %64 : vector<32x128xf32>
      %66 = arith.mulf %33, %18 : vector<32x128xf32>
      %67 = arith.mulf %27, %24 : vector<32x128xf32>
      %68 = arith.subf %66, %67 : vector<32x128xf32>
      %69 = arith.mulf %27, %21 : vector<32x128xf32>
      %70 = arith.mulf %30, %18 : vector<32x128xf32>
      %71 = arith.subf %69, %70 : vector<32x128xf32>
      %72 = arith.mulf %21, %42 : vector<32x128xf32>
      %73 = arith.mulf %24, %39 : vector<32x128xf32>
      %74 = arith.subf %72, %73 : vector<32x128xf32>
      %75 = arith.mulf %24, %36 : vector<32x128xf32>
      %76 = arith.mulf %18, %42 : vector<32x128xf32>
      %77 = arith.subf %75, %76 : vector<32x128xf32>
      %78 = arith.mulf %18, %39 : vector<32x128xf32>
      %79 = arith.mulf %21, %36 : vector<32x128xf32>
      %80 = arith.subf %78, %79 : vector<32x128xf32>
      %81 = arith.mulf %65, %65 : vector<32x128xf32>
      %82 = arith.mulf %68, %68 : vector<32x128xf32>
      %83 = arith.addf %81, %82 : vector<32x128xf32>
      %84 = arith.mulf %71, %71 : vector<32x128xf32>
      %85 = arith.addf %83, %84 : vector<32x128xf32>
      %86 = arith.mulf %74, %74 : vector<32x128xf32>
      %87 = arith.mulf %77, %77 : vector<32x128xf32>
      %88 = arith.addf %86, %87 : vector<32x128xf32>
      %89 = arith.mulf %80, %80 : vector<32x128xf32>
      %90 = arith.addf %88, %89 : vector<32x128xf32>
      %91 = arith.mulf %65, %36 : vector<32x128xf32>
      %92 = arith.mulf %68, %39 : vector<32x128xf32>
      %93 = arith.addf %91, %92 : vector<32x128xf32>
      %94 = arith.mulf %71, %42 : vector<32x128xf32>
      %95 = arith.addf %93, %94 : vector<32x128xf32>
      %96 = math.sqrt %47 : vector<32x128xf32>
      %cst_14 = arith.constant 1.329000e+00 : f32
      %97 = vector.broadcast %cst_14 : f32 to vector<32x128xf32>
      %98 = arith.subf %96, %97 : vector<32x128xf32>
      %99 = arith.mulf %98, %98 : vector<32x128xf32>
      %cst_15 = arith.constant 5.000000e+01 : f32
      %100 = vector.broadcast %cst_15 : f32 to vector<32x128xf32>
      %101 = arith.mulf %100, %99 : vector<32x128xf32>
      %102 = math.sqrt %85 : vector<32x128xf32>
      %103 = math.absf %52 : vector<32x128xf32>
      %104 = arith.minimumf %102, %103 : vector<32x128xf32>
      %105 = arith.maximumf %102, %103 : vector<32x128xf32>
      %cst_16 = arith.constant 9.99999991E-38 : f32
      %106 = vector.broadcast %cst_16 : f32 to vector<32x128xf32>
      %107 = arith.maximumf %105, %106 : vector<32x128xf32>
      %108 = tpu.reciprocal %107 {approx = true} : vector<32x128xf32> -> vector<32x128xf32>
      %109 = arith.mulf %107, %108 : vector<32x128xf32>
      %cst_17 = arith.constant 2.000000e+00 : f32
      %110 = vector.broadcast %cst_17 : f32 to vector<32x128xf32>
      %111 = arith.subf %110, %109 : vector<32x128xf32>
      %112 = arith.mulf %108, %111 : vector<32x128xf32>
      %113 = arith.mulf %104, %112 : vector<32x128xf32>
      %cst_18 = arith.constant 0.414213568 : f32
      %114 = vector.broadcast %cst_18 : f32 to vector<32x128xf32>
      %115 = arith.cmpf ogt, %113, %114 : vector<32x128xf32>
      %cst_19 = arith.constant 1.000000e+00 : f32
      %116 = vector.broadcast %cst_19 : f32 to vector<32x128xf32>
      %117 = arith.subf %113, %116 : vector<32x128xf32>
      %118 = arith.select %115, %117, %113 : vector<32x128xi1>, vector<32x128xf32>
      %cst_20 = arith.constant 1.000000e+00 : f32
      %119 = vector.broadcast %cst_20 : f32 to vector<32x128xf32>
      %120 = arith.addf %113, %119 : vector<32x128xf32>
      %cst_21 = arith.constant 1.000000e+00 : f32
      %121 = vector.broadcast %cst_21 : f32 to vector<32x128xf32>
      %122 = arith.select %115, %120, %121 : vector<32x128xi1>, vector<32x128xf32>
      %123 = tpu.reciprocal %122 {approx = true} : vector<32x128xf32> -> vector<32x128xf32>
      %124 = arith.mulf %122, %123 : vector<32x128xf32>
      %cst_22 = arith.constant 2.000000e+00 : f32
      %125 = vector.broadcast %cst_22 : f32 to vector<32x128xf32>
      %126 = arith.subf %125, %124 : vector<32x128xf32>
      %127 = arith.mulf %123, %126 : vector<32x128xf32>
      %128 = arith.mulf %118, %127 : vector<32x128xf32>
      %cst_23 = arith.constant 0.785398185 : f32
      %cst_24 = arith.constant 0.000000e+00 : f32
      %129 = vector.broadcast %cst_23 : f32 to vector<32x128xf32>
      %130 = vector.broadcast %cst_24 : f32 to vector<32x128xf32>
      %131 = arith.select %115, %129, %130 : vector<32x128xi1>, vector<32x128xf32>
      %132 = arith.mulf %128, %128 : vector<32x128xf32>
      %cst_25 = arith.constant 0.0805374458 : f32
      %133 = vector.broadcast %cst_25 : f32 to vector<32x128xf32>
      %134 = arith.mulf %133, %132 : vector<32x128xf32>
      %cst_26 = arith.constant 0.138776854 : f32
      %135 = vector.broadcast %cst_26 : f32 to vector<32x128xf32>
      %136 = arith.subf %134, %135 : vector<32x128xf32>
      %137 = arith.mulf %136, %132 : vector<32x128xf32>
      %cst_27 = arith.constant 0.199777111 : f32
      %138 = vector.broadcast %cst_27 : f32 to vector<32x128xf32>
      %139 = arith.addf %137, %138 : vector<32x128xf32>
      %140 = arith.mulf %139, %132 : vector<32x128xf32>
      %cst_28 = arith.constant 0.333329499 : f32
      %141 = vector.broadcast %cst_28 : f32 to vector<32x128xf32>
      %142 = arith.subf %140, %141 : vector<32x128xf32>
      %143 = arith.addf %131, %128 : vector<32x128xf32>
      %144 = arith.mulf %128, %132 : vector<32x128xf32>
      %145 = arith.mulf %144, %142 : vector<32x128xf32>
      %146 = arith.addf %143, %145 : vector<32x128xf32>
      %147 = arith.cmpf ogt, %102, %103 : vector<32x128xf32>
      %cst_29 = arith.constant 1.57079637 : f32
      %148 = vector.broadcast %cst_29 : f32 to vector<32x128xf32>
      %149 = arith.subf %148, %146 : vector<32x128xf32>
      %150 = arith.select %147, %149, %146 : vector<32x128xi1>, vector<32x128xf32>
      %cst_30 = arith.constant 0.000000e+00 : f32
      %151 = vector.broadcast %cst_30 : f32 to vector<32x128xf32>
      %152 = arith.cmpf olt, %52, %151 : vector<32x128xf32>
      %cst_31 = arith.constant 3.14159274 : f32
      %153 = vector.broadcast %cst_31 : f32 to vector<32x128xf32>
      %154 = arith.subf %153, %150 : vector<32x128xf32>
      %155 = arith.select %152, %154, %150 : vector<32x128xi1>, vector<32x128xf32>
      %156 = math.sqrt %90 : vector<32x128xf32>
      %cst_32 = arith.constant 0.000000e+00 : f32
      %157 = vector.broadcast %cst_32 : f32 to vector<32x128xf32>
      %158 = arith.subf %157, %57 : vector<32x128xf32>
      %159 = math.absf %158 : vector<32x128xf32>
      %160 = arith.minimumf %156, %159 : vector<32x128xf32>
      %161 = arith.maximumf %156, %159 : vector<32x128xf32>
      %cst_33 = arith.constant 9.99999991E-38 : f32
      %162 = vector.broadcast %cst_33 : f32 to vector<32x128xf32>
      %163 = arith.maximumf %161, %162 : vector<32x128xf32>
      %164 = tpu.reciprocal %163 {approx = true} : vector<32x128xf32> -> vector<32x128xf32>
      %165 = arith.mulf %163, %164 : vector<32x128xf32>
      %cst_34 = arith.constant 2.000000e+00 : f32
      %166 = vector.broadcast %cst_34 : f32 to vector<32x128xf32>
      %167 = arith.subf %166, %165 : vector<32x128xf32>
      %168 = arith.mulf %164, %167 : vector<32x128xf32>
      %169 = arith.mulf %160, %168 : vector<32x128xf32>
      %cst_35 = arith.constant 0.414213568 : f32
      %170 = vector.broadcast %cst_35 : f32 to vector<32x128xf32>
      %171 = arith.cmpf ogt, %169, %170 : vector<32x128xf32>
      %cst_36 = arith.constant 1.000000e+00 : f32
      %172 = vector.broadcast %cst_36 : f32 to vector<32x128xf32>
      %173 = arith.subf %169, %172 : vector<32x128xf32>
      %174 = arith.select %171, %173, %169 : vector<32x128xi1>, vector<32x128xf32>
      %cst_37 = arith.constant 1.000000e+00 : f32
      %175 = vector.broadcast %cst_37 : f32 to vector<32x128xf32>
      %176 = arith.addf %169, %175 : vector<32x128xf32>
      %cst_38 = arith.constant 1.000000e+00 : f32
      %177 = vector.broadcast %cst_38 : f32 to vector<32x128xf32>
      %178 = arith.select %171, %176, %177 : vector<32x128xi1>, vector<32x128xf32>
      %179 = tpu.reciprocal %178 {approx = true} : vector<32x128xf32> -> vector<32x128xf32>
      %180 = arith.mulf %178, %179 : vector<32x128xf32>
      %cst_39 = arith.constant 2.000000e+00 : f32
      %181 = vector.broadcast %cst_39 : f32 to vector<32x128xf32>
      %182 = arith.subf %181, %180 : vector<32x128xf32>
      %183 = arith.mulf %179, %182 : vector<32x128xf32>
      %184 = arith.mulf %174, %183 : vector<32x128xf32>
      %cst_40 = arith.constant 0.785398185 : f32
      %cst_41 = arith.constant 0.000000e+00 : f32
      %185 = vector.broadcast %cst_40 : f32 to vector<32x128xf32>
      %186 = vector.broadcast %cst_41 : f32 to vector<32x128xf32>
      %187 = arith.select %171, %185, %186 : vector<32x128xi1>, vector<32x128xf32>
      %188 = arith.mulf %184, %184 : vector<32x128xf32>
      %cst_42 = arith.constant 0.0805374458 : f32
      %189 = vector.broadcast %cst_42 : f32 to vector<32x128xf32>
      %190 = arith.mulf %189, %188 : vector<32x128xf32>
      %cst_43 = arith.constant 0.138776854 : f32
      %191 = vector.broadcast %cst_43 : f32 to vector<32x128xf32>
      %192 = arith.subf %190, %191 : vector<32x128xf32>
      %193 = arith.mulf %192, %188 : vector<32x128xf32>
      %cst_44 = arith.constant 0.199777111 : f32
      %194 = vector.broadcast %cst_44 : f32 to vector<32x128xf32>
      %195 = arith.addf %193, %194 : vector<32x128xf32>
      %196 = arith.mulf %195, %188 : vector<32x128xf32>
      %cst_45 = arith.constant 0.333329499 : f32
      %197 = vector.broadcast %cst_45 : f32 to vector<32x128xf32>
      %198 = arith.subf %196, %197 : vector<32x128xf32>
      %199 = arith.addf %187, %184 : vector<32x128xf32>
      %200 = arith.mulf %184, %188 : vector<32x128xf32>
      %201 = arith.mulf %200, %198 : vector<32x128xf32>
      %202 = arith.addf %199, %201 : vector<32x128xf32>
      %203 = arith.cmpf ogt, %156, %159 : vector<32x128xf32>
      %cst_46 = arith.constant 1.57079637 : f32
      %204 = vector.broadcast %cst_46 : f32 to vector<32x128xf32>
      %205 = arith.subf %204, %202 : vector<32x128xf32>
      %206 = arith.select %203, %205, %202 : vector<32x128xi1>, vector<32x128xf32>
      %cst_47 = arith.constant 0.000000e+00 : f32
      %207 = vector.broadcast %cst_47 : f32 to vector<32x128xf32>
      %208 = arith.cmpf olt, %158, %207 : vector<32x128xf32>
      %cst_48 = arith.constant 3.14159274 : f32
      %209 = vector.broadcast %cst_48 : f32 to vector<32x128xf32>
      %210 = arith.subf %209, %206 : vector<32x128xf32>
      %211 = arith.select %208, %210, %206 : vector<32x128xi1>, vector<32x128xf32>
      %212 = arith.mulf %62, %47 : vector<32x128xf32>
      %213 = arith.mulf %52, %57 : vector<32x128xf32>
      %214 = arith.subf %212, %213 : vector<32x128xf32>
      %215 = arith.mulf %95, %95 : vector<32x128xf32>
      %216 = arith.mulf %215, %47 : vector<32x128xf32>
      %217 = arith.mulf %214, %214 : vector<32x128xf32>
      %218 = arith.addf %217, %216 : vector<32x128xf32>
      %cst_49 = arith.constant 9.99999991E-38 : f32
      %219 = vector.broadcast %cst_49 : f32 to vector<32x128xf32>
      %220 = arith.maximumf %218, %219 : vector<32x128xf32>
      %221 = math.rsqrt %220 : vector<32x128xf32>
      %cst_50 = arith.constant 0.000000e+00 : f32
      %222 = vector.broadcast %cst_50 : f32 to vector<32x128xf32>
      %223 = arith.cmpf ogt, %218, %222 : vector<32x128xf32>
      %224 = arith.mulf %214, %221 : vector<32x128xf32>
      %cst_51 = arith.constant 1.000000e+00 : f32
      %225 = vector.broadcast %cst_51 : f32 to vector<32x128xf32>
      %226 = arith.select %223, %224, %225 : vector<32x128xi1>, vector<32x128xf32>
      %cst_52 = arith.constant 2.0280726 : f32
      %227 = vector.broadcast %cst_52 : f32 to vector<32x128xf32>
      %228 = arith.subf %155, %227 : vector<32x128xf32>
      %229 = arith.mulf %228, %228 : vector<32x128xf32>
      %cst_53 = arith.constant 2.12406564 : f32
      %230 = vector.broadcast %cst_53 : f32 to vector<32x128xf32>
      %231 = arith.subf %211, %230 : vector<32x128xf32>
      %232 = arith.mulf %231, %231 : vector<32x128xf32>
      %233 = arith.addf %229, %232 : vector<32x128xf32>
      %cst_54 = arith.constant 5.000000e+01 : f32
      %234 = vector.broadcast %cst_54 : f32 to vector<32x128xf32>
      %235 = arith.mulf %234, %233 : vector<32x128xf32>
      %cst_55 = arith.constant 1.000000e+02 : f32
      %236 = vector.broadcast %cst_55 : f32 to vector<32x128xf32>
      %237 = arith.mulf %236, %226 : vector<32x128xf32>
      %238 = arith.addf %235, %237 : vector<32x128xf32>
      %239 = tpu.iota {dimensions = array<i32: 0>} : vector<32x128xi32>
      %240 = tpu.iota {dimensions = array<i32: 1>} : vector<32x128xi32>
      %241 = vector.broadcast %15 : i32 to vector<32x128xi32>
      %242 = arith.addi %241, %239 : vector<32x128xi32>
      %c128_i32 = arith.constant 128 : i32
      %243 = vector.broadcast %c128_i32 : i32 to vector<32x128xi32>
      %244 = arith.muli %242, %243 : vector<32x128xi32>
      %245 = vector.broadcast %5 : i32 to vector<32x128xi32>
      %246 = arith.addi %245, %244 : vector<32x128xi32>
      %247 = arith.addi %246, %240 : vector<32x128xi32>
      %c30_i32_56 = arith.constant 30 : i32
      %248 = vector.broadcast %c30_i32_56 : i32 to vector<32x128xi32>
      %249 = arith.cmpi slt, %247, %248 : vector<32x128xi32>
      %250 = arith.extui %249 : vector<32x128xi1> to vector<32x128xi32>
      %251 = arith.sitofp %250 : vector<32x128xi32> to vector<32x128xf32>
      %252 = arith.mulf %101, %251 : vector<32x128xf32>
      %253 = arith.mulf %238, %251 : vector<32x128xf32>
      %254 = vector.extract_strided_slice %252 {offsets = [0, 0], sizes = [8, 128], strides = [1, 1]} : vector<32x128xf32> to vector<8x128xf32>
      %255 = vector.extract_strided_slice %252 {offsets = [8, 0], sizes = [8, 128], strides = [1, 1]} : vector<32x128xf32> to vector<8x128xf32>
      %256 = arith.addf %254, %255 : vector<8x128xf32>
      %257 = vector.extract_strided_slice %252 {offsets = [16, 0], sizes = [8, 128], strides = [1, 1]} : vector<32x128xf32> to vector<8x128xf32>
      %258 = arith.addf %256, %257 : vector<8x128xf32>
      %259 = vector.extract_strided_slice %252 {offsets = [24, 0], sizes = [8, 128], strides = [1, 1]} : vector<32x128xf32> to vector<8x128xf32>
      %260 = arith.addf %258, %259 : vector<8x128xf32>
      %261 = arith.addf %8, %260 : vector<8x128xf32>
      %262 = vector.extract_strided_slice %253 {offsets = [0, 0], sizes = [8, 128], strides = [1, 1]} : vector<32x128xf32> to vector<8x128xf32>
      %263 = vector.extract_strided_slice %253 {offsets = [8, 0], sizes = [8, 128], strides = [1, 1]} : vector<32x128xf32> to vector<8x128xf32>
      %264 = arith.addf %262, %263 : vector<8x128xf32>
      %265 = vector.extract_strided_slice %253 {offsets = [16, 0], sizes = [8, 128], strides = [1, 1]} : vector<32x128xf32> to vector<8x128xf32>
      %266 = arith.addf %264, %265 : vector<8x128xf32>
      %267 = vector.extract_strided_slice %253 {offsets = [24, 0], sizes = [8, 128], strides = [1, 1]} : vector<32x128xf32> to vector<8x128xf32>
      %268 = arith.addf %266, %267 : vector<8x128xf32>
      %269 = arith.addf %8, %268 : vector<8x128xf32>
      %c1_i32_57 = arith.constant 1 : i32
      %c0_58 = arith.constant 0 : index
      %c0_59 = arith.constant 0 : index
      %270 = vector.load %arg3[%c0_58, %c0_59] : memref<8x128xf32, #tpu.memory_space<vmem>>, vector<8x128xf32>
      %271 = arith.addf %270, %261 : vector<8x128xf32>
      %c0_60 = arith.constant 0 : index
      %c0_61 = arith.constant 0 : index
      %272 = vector.load %arg3[%c0_60, %c0_61] : memref<8x128xf32, #tpu.memory_space<vmem>>, vector<8x128xf32>
      tpu.vector_store %arg3[%c0_60, %c0_61], %271 {strides = array<i32>} : memref<8x128xf32, #tpu.memory_space<vmem>>, vector<8x128xf32>,
      %c0_62 = arith.constant 0 : index
      %c0_63 = arith.constant 0 : index
      %273 = vector.load %arg4[%c0_62, %c0_63] : memref<8x128xf32, #tpu.memory_space<vmem>>, vector<8x128xf32>
      %274 = arith.addf %273, %269 : vector<8x128xf32>
      %c0_64 = arith.constant 0 : index
      %c0_65 = arith.constant 0 : index
      %275 = vector.load %arg4[%c0_64, %c0_65] : memref<8x128xf32, #tpu.memory_space<vmem>>, vector<8x128xf32>
      tpu.vector_store %arg4[%c0_64, %c0_65], %274 {strides = array<i32>} : memref<8x128xf32, #tpu.memory_space<vmem>>, vector<8x128xf32>,
    } else {
    }
    return
  }
  func.func @transform_0(%arg0: i32, %arg1: i32) -> (i32, i32, i32) {
    %c1_i32 = arith.constant 1 : i32
    %0 = arith.muli %arg0, %c1_i32 : i32
    %1 = arith.addi %0, %arg1 : i32
    %c0_i32 = arith.constant 0 : i32
    %c0_i32_0 = arith.constant 0 : i32
    %c0_i32_1 = arith.constant 0 : i32
    return %c0_i32, %1, %c0_i32_0 : i32, i32, i32
  }
  func.func @transform_1(%arg0: i32, %arg1: i32) -> (i32, i32) {
    %c0_i32 = arith.constant 0 : i32
    %c0_i32_0 = arith.constant 0 : i32
    return %arg0, %c0_i32 : i32, i32
  }
  func.func @transform_2(%arg0: i32, %arg1: i32) -> (i32, i32) {
    %c0_i32 = arith.constant 0 : i32
    %c0_i32_0 = arith.constant 0 : i32
    return %arg0, %c0_i32 : i32, i32
  }
}

</mosaic_0001>

<llo_original>
// kernel: _bond_restraint_impl.1
$region0: #{_bond_restraint_impl.1}
  #allocation0 [shape = 'u32[]', space=smem, size = 0x4, offset = 0x4, fixed_abs, tag = 'smem constant byte address 0x4 - core index']
  #allocation1 [shape = 'u32[144,128]{1,0:T(1,128)}', space=vmem, size = 0x12000, scoped, tag = 'internal scratch']
  %s0 = inlined_call_operand.vmem [shape: f32[9,64,128], index: 0, kind: input, shape index: {}]
  %s1 = inlined_call_operand.vmem [shape: f32[16,128], index: 1, kind: output, shape index: {0}]
  %s2 = inlined_call_operand.vmem [shape: f32[16,128], index: 2, kind: output, shape index: {1}]
  %3 = xla_tuple %s1, %s2
  %s4 = sld [smem:[#allocation0]]
  $region95: #{_bond_restraint_impl.1} parent=0
    _
  %s6 = ssub.s32 1, %s4
  %s7 = scalar_select 0, %s6, %s4
  $region1: #{_bond_restraint_impl.1} parent=0
    #allocation2 [shape = 'u8[294912]{0}', space=vmem, size = 0x48000, scoped, tag = 'input window, operand 0']
    loop: start=0, step=1, limit=4
    $region2: #{_bond_restraint_impl.1} parent=1 // loop_pre_header
      _
    $region3: #{_bond_restraint_impl.1} parent=1 // loop_header
      %s9 = sphi 0, %s13
      %p10 = scmp.ge.s32.totalorder %s9, 4
      %s16 = sphi 0, %s28
      %s17 = sphi 0, %s24
      %s18 = sphi 0, %s16
      %s19 = sphi 0, %s17
      %s20 = sphi 0, %s18
      %s21 = sphi 0, %s19
      %s33 = sphi 0, %s35
      %s36 = sphi 0, %s33
      %s37 = sphi 0, %s36
      %s53 = sphi 0, %s37
      %s59 = sphi 0, %s61
      %s62 = sphi 0, %s59
      %s63 = sphi 0, %s62
      %s79 = sphi 0, %s63
      %s85 = sphi 0, %s87
      %s88 = sphi 0, %s85
      %s89 = sphi 0, %s88
      %s105 = sphi 0, %s89
    $region4: #{_bond_restraint_impl.1} parent=1 // loop_header_branch
      %12 = sbr.rel (%p10) target = $region8
    $region5: #{_bond_restraint_impl.1} parent=1 // loop_body
      %s14 = ssub.s32 %s9, 1
      %s15 = ssub.s32 %s9, 2
      %s22 = sadd.s32 1, %s17
      %p23 = scmp.ge.s32.totalorder %s22, 1
      %s24 = scalar_select %p23, 0, %s22
      %s25 = sadd.s32 1, %s16
      %s26 = scalar_select %p23, %s25, %s16
      %p27 = scmp.ge.s32.totalorder %s26, 2
      %s28 = scalar_select %p27, 0, %s26
      %s29 = sadd.s32 %s16, %s17
      %s30 = sadd.s32 %s28, %s24
      %s31 = ssub.s32 %s29, %s30
      %p32 = scmp.eq.s32.totalorder %s31, 0
      %s34 = sadd.s32 %s33, 1
      %s35 = scalar_select %p32, %s33, %s34
      %p38 = pneg %p32
      %p39 = scmp.eq.s32.totalorder %s9, 1
      %p40 = por %p38, %p39
      %p41 = scmp.ne.s32.totalorder %s33, %s36
      %p42 = scmp.eq.s32.totalorder %s9, 0
      %p43 = por %p41, %p42
      %p44 = scmp.ne.s32.totalorder %s33, %s36
      %p45 = scmp.eq.s32.totalorder %s14, 1
      %p46 = por %p44, %p45
      %p47 = scmp.ne.s32.totalorder %s36, %s37
      %p48 = scmp.eq.s32.totalorder %s14, 0
      %p49 = por %p47, %p48
      %p50 = scmp.ne.s32.totalorder %s36, %s37
      %p51 = scmp.eq.s32.totalorder %s15, 1
      %p52 = por %p50, %p51
      %p54 = scmp.ne.s32.totalorder %s37, %s53
      %p55 = scmp.eq.s32.totalorder %s15, 0
      %p56 = por %p54, %p55
      %s57 = ssub.s32 %s16, %s28
      %p58 = scmp.eq.s32.totalorder %s57, 0
      %s60 = sadd.s32 %s59, 1
      %s61 = scalar_select %p58, %s59, %s60
      %p64 = pneg %p58
      %p65 = scmp.eq.s32.totalorder %s9, 1
      %p66 = por %p64, %p65
      %p67 = scmp.ne.s32.totalorder %s59, %s62
      %p68 = scmp.eq.s32.totalorder %s9, 0
      %p69 = por %p67, %p68
      %p70 = scmp.ne.s32.totalorder %s59, %s62
      %p71 = scmp.eq.s32.totalorder %s14, 1
      %p72 = por %p70, %p71
      %p73 = scmp.ne.s32.totalorder %s62, %s63
      %p74 = scmp.eq.s32.totalorder %s14, 0
      %p75 = por %p73, %p74
      %p76 = scmp.ne.s32.totalorder %s62, %s63
      %p77 = scmp.eq.s32.totalorder %s15, 1
      %p78 = por %p76, %p77
      %p80 = scmp.ne.s32.totalorder %s63, %s79
      %p81 = scmp.eq.s32.totalorder %s15, 0
      %p82 = por %p80, %p81
      %s83 = ssub.s32 %s16, %s28
      %p84 = scmp.eq.s32.totalorder %s83, 0
      %s86 = sadd.s32 %s85, 1
      %s87 = scalar_select %p84, %s85, %s86
      %p90 = pneg %p84
      %p91 = scmp.eq.s32.totalorder %s9, 1
      %p92 = por %p90, %p91
      %p93 = scmp.ne.s32.totalorder %s85, %s88
      %p94 = scmp.eq.s32.totalorder %s9, 0
      %p95 = por %p93, %p94
      %p96 = scmp.ne.s32.totalorder %s85, %s88
      %p97 = scmp.eq.s32.totalorder %s14, 1
      %p98 = por %p96, %p97
      %p99 = scmp.ne.s32.totalorder %s88, %s89
      %p100 = scmp.eq.s32.totalorder %s14, 0
      %p101 = por %p99, %p100
      %p102 = scmp.ne.s32.totalorder %s88, %s89
      %p103 = scmp.eq.s32.totalorder %s15, 1
      %p104 = por %p102, %p103
      %p106 = scmp.ne.s32.totalorder %s89, %s105
      %p107 = scmp.eq.s32.totalorder %s15, 0
      %p108 = por %p106, %p107
      %p109 = scmp.le.s32.totalorder 1, %s9
      %p110 = scmp.lt.s32.totalorder %s9, 3
      %p111 = pnand %p109, %p110
      %p112 = pneg %p111
      // Predicated region
      $region9: #{_bond_restraint_impl.1} parent=5 // pred_check
        _
      $region10: #{_bond_restraint_impl.1} parent=5 // pred_check_branch
        %114 = sbr.rel (%p111) target = $region12
      $region11: #{_bond_restraint_impl.1} parent=5 // pred_region
        %s115 = ssub.s32 %s9, 1
      $region12: #{_bond_restraint_impl.1} parent=5 // pred_fallthru
        _
      %p116 = scmp.lt.s32.totalorder %s9, 2
      // Predicated region
      $region13: #{_bond_restraint_impl.1} parent=5 // pred_check
        %p117 = pneg %p116
      $region14: #{_bond_restraint_impl.1} parent=5 // pred_check_branch
        %119 = sbr.rel (%p117) target = $region16
      $region15: #{_bond_restraint_impl.1} parent=5 // pred_region
        // Predicated region
        $region17: #{_bond_restraint_impl.1} parent=15 // pred_check
          %p120 = pneg %p43
        $region18: #{_bond_restraint_impl.1} parent=15 // pred_check_branch
          %122 = sbr.rel (%p120) target = $region20
        $region19: #{_bond_restraint_impl.1} parent=15 // pred_region
          %s123 = sand.u32 %s33, 1
          %s124 = sand.u32 %s33, 1
          %s125 = smul.addr %s124, 288
          %s126 = scalar_lea.vmem [#allocation2], %s125
          %s127 = sadd.s32 %s16, %s17
          %s128 = smul.u32 4, %s127
          %s129 = smul.addr %s128, 8
          %s130 = scalar_lea.vmem %s0, %s129
          // Predicated region
          $region21: #{_bond_restraint_impl.1} parent=19 // pred_check
            _
          $region22: #{_bond_restraint_impl.1} parent=19 // pred_check_branch
            %132 = sbr.rel (0) target = $region24
          $region23: #{_bond_restraint_impl.1} parent=19 // pred_region
            // Predicated region
            $region25: #{_bond_restraint_impl.1} parent=23 // pred_check
              _
            $region26: #{_bond_restraint_impl.1} parent=23 // pred_check_branch
              %134 = sbr.rel (0) target = $region28
            $region27: #{_bond_restraint_impl.1} parent=23 // pred_region
              // Predicated region
              $region40: #{_bond_restraint_impl.1} parent=27 // pred_check
                _
              $region41: #{_bond_restraint_impl.1} parent=27 // pred_check_branch
                %219 = sbr.rel (0) target = $region43
              $region42: #{_bond_restraint_impl.1} parent=27 // pred_region
                loop: start=0, step=1, limit=1
                $region44: #{_bond_restraint_impl.1} parent=42 // loop_pre_header
                  _
                $region45: #{_bond_restraint_impl.1} parent=42 // loop_header
                  %s221 = sphi 0, %s225
                  %p222 = scmp.ge.s32.totalorder %s221, 1
                  %s226 = sphi %s130, %s130
                  %s227 = sphi %s126, %s126
                $region46: #{_bond_restraint_impl.1} parent=42 // loop_header_branch
                  %224 = sbr.rel (%p222) target = $region50
                $region47: #{_bond_restraint_impl.1} parent=42 // loop_body
                  %v228 = vld [vmem:[%s226] sm:$0xff]
                  %229 = vst [vmem:[%s227] sm:$0xff] %v228
                  %v230 = vld [vmem:[%s226 + $0x8] sm:$0xff]
                  %231 = vst [vmem:[%s227 + $0x8] sm:$0xff] %v230
                  %v232 = vld [vmem:[%s226 + $0x10] sm:$0xff]
                  %233 = vst [vmem:[%s227 + $0x10] sm:$0xff] %v232
                  %v234 = vld [vmem:[%s226 + $0x18] sm:$0xff]
                  %235 = vst [vmem:[%s227 + $0x18] sm:$0xff] %v234
                  %v236 = vld [vmem:[%s226 + $0x40] sm:$0xff]
                  %237 = vst [vmem:[%s227 + $0x20] sm:$0xff] %v236
                  %v238 = vld [vmem:[%s226 + $0x48] sm:$0xff]
                  %239 = vst [vmem:[%s227 + $0x28] sm:$0xff] %v238
                  %v240 = vld [vmem:[%s226 + $0x50] sm:$0xff]
                  %241 = vst [vmem:[%s227 + $0x30] sm:$0xff] %v240
                  %v242 = vld [vmem:[%s226 + $0x58] sm:$0xff]
                  %243 = vst [vmem:[%s227 + $0x38] sm:$0xff] %v242
                  %v244 = vld [vmem:[%s226 + $0x80] sm:$0xff]
                  %245 = vst [vmem:[%s227 + $0x40] sm:$0xff] %v244
                  %v246 = vld [vmem:[%s226 + $0x88] sm:$0xff]
                  %247 = vst [vmem:[%s227 + $0x48] sm:$0xff] %v246
                  %v248 = vld [vmem:[%s226 + $0x90] sm:$0xff]
                  %249 = vst [vmem:[%s227 + $0x50] sm:$0xff] %v248
                  %v250 = vld [vmem:[%s226 + $0x98] sm:$0xff]
                  %251 = vst [vmem:[%s227 + $0x58] sm:$0xff] %v250
                  %v252 = vld [vmem:[%s226 + $0xc0] sm:$0xff]
                  %253 = vst [vmem:[%s227 + $0x60] sm:$0xff] %v252
                  %v254 = vld [vmem:[%s226 + $0xc8] sm:$0xff]
                  %255 = vst [vmem:[%s227 + $0x68] sm:$0xff] %v254
                  %v256 = vld [vmem:[%s226 + $0xd0] sm:$0xff]
                  %257 = vst [vmem:[%s227 + $0x70] sm:$0xff] %v256
                  %v258 = vld [vmem:[%s226 + $0xd8] sm:$0xff]
                  %259 = vst [vmem:[%s227 + $0x78] sm:$0xff] %v258
                  %v260 = vld [vmem:[%s226 + $0x100] sm:$0xff]
                  %261 = vst [vmem:[%s227 + $0x80] sm:$0xff] %v260
                  %v262 = vld [vmem:[%s226 + $0x108] sm:$0xff]
                  %263 = vst [vmem:[%s227 + $0x88] sm:$0xff] %v262
                  %v264 = vld [vmem:[%s226 + $0x110] sm:$0xff]
                  %265 = vst [vmem:[%s227 + $0x90] sm:$0xff] %v264
                  %v266 = vld [vmem:[%s226 + $0x118] sm:$0xff]
                  %267 = vst [vmem:[%s227 + $0x98] sm:$0xff] %v266
                  %v268 = vld [vmem:[%s226 + $0x140] sm:$0xff]
                  %269 = vst [vmem:[%s227 + $0xa0] sm:$0xff] %v268
                  %v270 = vld [vmem:[%s226 + $0x148] sm:$0xff]
                  %271 = vst [vmem:[%s227 + $0xa8] sm:$0xff] %v270
                  %v272 = vld [vmem:[%s226 + $0x150] sm:$0xff]
                  %273 = vst [vmem:[%s227 + $0xb0] sm:$0xff] %v272
                  %v274 = vld [vmem:[%s226 + $0x158] sm:$0xff]
                  %275 = vst [vmem:[%s227 + $0xb8] sm:$0xff] %v274
                  %v276 = vld [vmem:[%s226 + $0x180] sm:$0xff]
                  %277 = vst [vmem:[%s227 + $0xc0] sm:$0xff] %v276
                  %v278 = vld [vmem:[%s226 + $0x188] sm:$0xff]
                  %279 = vst [vmem:[%s227 + $0xc8] sm:$0xff] %v278
                  %v280 = vld [vmem:[%s226 + $0x190] sm:$0xff]
                  %281 = vst [vmem:[%s227 + $0xd0] sm:$0xff] %v280
                  %v282 = vld [vmem:[%s226 + $0x198] sm:$0xff]
                  %283 = vst [vmem:[%s227 + $0xd8] sm:$0xff] %v282
                  %v284 = vld [vmem:[%s226 + $0x1c0] sm:$0xff]
                  %285 = vst [vmem:[%s227 + $0xe0] sm:$0xff] %v284
                  %v286 = vld [vmem:[%s226 + $0x1c8] sm:$0xff]
                  %287 = vst [vmem:[%s227 + $0xe8] sm:$0xff] %v286
                  %v288 = vld [vmem:[%s226 + $0x1d0] sm:$0xff]
                  %289 = vst [vmem:[%s227 + $0xf0] sm:$0xff] %v288
                  %v290 = vld [vmem:[%s226 + $0x1d8] sm:$0xff]
                  %291 = vst [vmem:[%s227 + $0xf8] sm:$0xff] %v290
                  %v292 = vld [vmem:[%s226 + $0x200] sm:$0xff]
                  %293 = vst [vmem:[%s227 + $0x100] sm:$0xff] %v292
                  %v294 = vld [vmem:[%s226 + $0x208] sm:$0xff]
                  %295 = vst [vmem:[%s227 + $0x108] sm:$0xff] %v294
                  %v296 = vld [vmem:[%s226 + $0x210] sm:$0xff]
                  %297 = vst [vmem:[%s227 + $0x110] sm:$0xff] %v296
                  %v298 = vld [vmem:[%s226 + $0x218] sm:$0xff]
                  %299 = vst [vmem:[%s227 + $0x118] sm:$0xff] %v298
                $region48: #{_bond_restraint_impl.1} parent=42 // loop_footer
                  %s225 = sadd.s32 1, %s221
                $region49: #{_bond_restraint_impl.1} parent=42 // loop_footer_branch
                  %220 = sbr.rel target = $region45
                $region50: #{_bond_restraint_impl.1} parent=42 // loop_exit
                  _
              $region43: #{_bond_restraint_impl.1} parent=27 // pred_fallthru
                _
              // Predicated region
              $region51: #{_bond_restraint_impl.1} parent=27 // pred_check
                _
              $region52: #{_bond_restraint_impl.1} parent=27 // pred_check_branch
                %301 = sbr.rel target = $region54
              $region53: #{_bond_restraint_impl.1} parent=27 // pred_region
                _
              $region54: #{_bond_restraint_impl.1} parent=27 // pred_fallthru
                _
            $region28: #{_bond_restraint_impl.1} parent=23 // pred_fallthru
              _
            // Predicated region
            $region29: #{_bond_restraint_impl.1} parent=23 // pred_check
              _
            $region30: #{_bond_restraint_impl.1} parent=23 // pred_check_branch
              %136 = sbr.rel target = $region32
            $region31: #{_bond_restraint_impl.1} parent=23 // pred_region
              loop: start=0, step=1, limit=1
              $region33: #{_bond_restraint_impl.1} parent=31 // loop_pre_header
                _
              $region34: #{_bond_restraint_impl.1} parent=31 // loop_header
                %s139 = sphi 0, %s143
                %p140 = scmp.ge.s32.totalorder %s139, 1
                %s144 = sphi %s130, %s130
                %s145 = sphi %s126, %s126
              $region35: #{_bond_restraint_impl.1} parent=31 // loop_header_branch
                %142 = sbr.rel (%p140) target = $region39
              $region36: #{_bond_restraint_impl.1} parent=31 // loop_body
                %v146 = vld [vmem:[%s144] sm:$0xff]
                %147 = vst [vmem:[%s145] sm:$0xff] %v146
                %v148 = vld [vmem:[%s144 + $0x8] sm:$0xff]
                %149 = vst [vmem:[%s145 + $0x8] sm:$0xff] %v148
                %v150 = vld [vmem:[%s144 + $0x10] sm:$0xff]
                %151 = vst [vmem:[%s145 + $0x10] sm:$0xff] %v150
                %v152 = vld [vmem:[%s144 + $0x18] sm:$0xff]
                %153 = vst [vmem:[%s145 + $0x18] sm:$0xff] %v152
                %v154 = vld [vmem:[%s144 + $0x40] sm:$0xff]
                %155 = vst [vmem:[%s145 + $0x20] sm:$0xff] %v154
                %v156 = vld [vmem:[%s144 + $0x48] sm:$0xff]
                %157 = vst [vmem:[%s145 + $0x28] sm:$0xff] %v156
                %v158 = vld [vmem:[%s144 + $0x50] sm:$0xff]
                %159 = vst [vmem:[%s145 + $0x30] sm:$0xff] %v158
                %v160 = vld [vmem:[%s144 + $0x58] sm:$0xff]
                %161 = vst [vmem:[%s145 + $0x38] sm:$0xff] %v160
                %v162 = vld [vmem:[%s144 + $0x80] sm:$0xff]
                %163 = vst [vmem:[%s145 + $0x40] sm:$0xff] %v162
                %v164 = vld [vmem:[%s144 + $0x88] sm:$0xff]
                %165 = vst [vmem:[%s145 + $0x48] sm:$0xff] %v164
                %v166 = vld [vmem:[%s144 + $0x90] sm:$0xff]
                %167 = vst [vmem:[%s145 + $0x50] sm:$0xff] %v166
                %v168 = vld [vmem:[%s144 + $0x98] sm:$0xff]
                %169 = vst [vmem:[%s145 + $0x58] sm:$0xff] %v168
                %v170 = vld [vmem:[%s144 + $0xc0] sm:$0xff]
                %171 = vst [vmem:[%s145 + $0x60] sm:$0xff] %v170
                %v172 = vld [vmem:[%s144 + $0xc8] sm:$0xff]
                %173 = vst [vmem:[%s145 + $0x68] sm:$0xff] %v172
                %v174 = vld [vmem:[%s144 + $0xd0] sm:$0xff]
                %175 = vst [vmem:[%s145 + $0x70] sm:$0xff] %v174
                %v176 = vld [vmem:[%s144 + $0xd8] sm:$0xff]
                %177 = vst [vmem:[%s145 + $0x78] sm:$0xff] %v176
                %v178 = vld [vmem:[%s144 + $0x100] sm:$0xff]
                %179 = vst [vmem:[%s145 + $0x80] sm:$0xff] %v178
                %v180 = vld [vmem:[%s144 + $0x108] sm:$0xff]
                %181 = vst [vmem:[%s145 + $0x88] sm:$0xff] %v180
                %v182 = vld [vmem:[%s144 + $0x110] sm:$0xff]
                %183 = vst [vmem:[%s145 + $0x90] sm:$0xff] %v182
                %v184 = vld [vmem:[%s144 + $0x118] sm:$0xff]
                %185 = vst [vmem:[%s145 + $0x98] sm:$0xff] %v184
                %v186 = vld [vmem:[%s144 + $0x140] sm:$0xff]
                %187 = vst [vmem:[%s145 + $0xa0] sm:$0xff] %v186
                %v188 = vld [vmem:[%s144 + $0x148] sm:$0xff]
                %189 = vst [vmem:[%s145 + $0xa8] sm:$0xff] %v188
                %v190 = vld [vmem:[%s144 + $0x150] sm:$0xff]
                %191 = vst [vmem:[%s145 + $0xb0] sm:$0xff] %v190
                %v192 = vld [vmem:[%s144 + $0x158] sm:$0xff]
                %193 = vst [vmem:[%s145 + $0xb8] sm:$0xff] %v192
                %v194 = vld [vmem:[%s144 + $0x180] sm:$0xff]
                %195 = vst [vmem:[%s145 + $0xc0] sm:$0xff] %v194
                %v196 = vld [vmem:[%s144 + $0x188] sm:$0xff]
                %197 = vst [vmem:[%s145 + $0xc8] sm:$0xff] %v196
                %v198 = vld [vmem:[%s144 + $0x190] sm:$0xff]
                %199 = vst [vmem:[%s145 + $0xd0] sm:$0xff] %v198
                %v200 = vld [vmem:[%s144 + $0x198] sm:$0xff]
                %201 = vst [vmem:[%s145 + $0xd8] sm:$0xff] %v200
                %v202 = vld [vmem:[%s144 + $0x1c0] sm:$0xff]
                %203 = vst [vmem:[%s145 + $0xe0] sm:$0xff] %v202
                %v204 = vld [vmem:[%s144 + $0x1c8] sm:$0xff]
                %205 = vst [vmem:[%s145 + $0xe8] sm:$0xff] %v204
                %v206 = vld [vmem:[%s144 + $0x1d0] sm:$0xff]
                %207 = vst [vmem:[%s145 + $0xf0] sm:$0xff] %v206
                %v208 = vld [vmem:[%s144 + $0x1d8] sm:$0xff]
                %209 = vst [vmem:[%s145 + $0xf8] sm:$0xff] %v208
                %v210 = vld [vmem:[%s144 + $0x200] sm:$0xff]
                %211 = vst [vmem:[%s145 + $0x100] sm:$0xff] %v210
                %v212 = vld [vmem:[%s144 + $0x208] sm:$0xff]
                %213 = vst [vmem:[%s145 + $0x108] sm:$0xff] %v212
                %v214 = vld [vmem:[%s144 + $0x210] sm:$0xff]
                %215 = vst [vmem:[%s145 + $0x110] sm:$0xff] %v214
                %v216 = vld [vmem:[%s144 + $0x218] sm:$0xff]
                %217 = vst [vmem:[%s145 + $0x118] sm:$0xff] %v216
              $region37: #{_bond_restraint_impl.1} parent=31 // loop_footer
                %s143 = sadd.s32 1, %s139
              $region38: #{_bond_restraint_impl.1} parent=31 // loop_footer_branch
                %138 = sbr.rel target = $region34
              $region39: #{_bond_restraint_impl.1} parent=31 // loop_exit
                _
            $region32: #{_bond_restraint_impl.1} parent=23 // pred_fallthru
              _
          $region24: #{_bond_restraint_impl.1} parent=19 // pred_fallthru
            _
          %302 = vnop
        $region20: #{_bond_restraint_impl.1} parent=15 // pred_fallthru
          _
      $region16: #{_bond_restraint_impl.1} parent=5 // pred_fallthru
        _
      %p303 = scmp.le.s32.totalorder 1, %s9
      %p304 = scmp.lt.s32.totalorder %s9, 3
      %p305 = pnand %p303, %p304
      %p306 = pneg %p305
      // Predicated region
      $region55: #{_bond_restraint_impl.1} parent=5 // pred_check
        _
      $region56: #{_bond_restraint_impl.1} parent=5 // pred_check_branch
        %308 = sbr.rel (%p305) target = $region58
      $region57: #{_bond_restraint_impl.1} parent=5 // pred_region
        %s309 = ssub.s32 %s9, 1
        %s310 = sand.u32 %s36, 1
        %s311 = sand.u32 %s36, 1
        %s312 = smul.addr %s311, 288
        %s313 = scalar_lea.vmem [#allocation2], %s312
        // Predicated region
        $region59: #{_bond_restraint_impl.1} parent=57 // pred_check
          %p314 = pneg %p49
        $region60: #{_bond_restraint_impl.1} parent=57 // pred_check_branch
          %316 = sbr.rel (%p314) target = $region62
        $region61: #{_bond_restraint_impl.1} parent=57 // pred_region
          _
        $region62: #{_bond_restraint_impl.1} parent=57 // pred_fallthru
          _
        %s317 = sand.u32 %s36, 1
        %s318 = sand.u32 %s36, 1
        %s319 = smul.addr %s318, 288
        %s320 = scalar_lea.vmem [#allocation2], %s319
        %p321 = pneg %p49
        %p322 = pneg %p46
        %p323 = pneg %p75
        %p324 = pneg %p72
        %p325 = scmp.lt.s32.totalorder %s18, 1
        %s326 = scalar_select %p325, %s18, 1
        %s327 = smul.addr %s326, 8
        %s328 = scalar_lea.vmem %s1, %s327
        %p329 = pneg %p101
        %p330 = pneg %p98
        %p331 = scmp.lt.s32.totalorder %s18, 1
        %s332 = scalar_select %p331, %s18, 1
        %s333 = smul.addr %s332, 8
        %s334 = scalar_lea.vmem %s2, %s333
        %s335 = sadd.s32 %s18, %s19
        %s336 = smul.u32 4, %s335
        %p337 = scmp.lt.s32.totalorder %s18, 1
        %s338 = scalar_select %p337, %s18, 1
        %s339 = smul.addr %s338, 8
        %s340 = scalar_lea.vmem %s1, %s339
        %p341 = scmp.lt.s32.totalorder %s18, 1
        %s342 = scalar_select %p341, %s18, 1
        %s343 = smul.addr %s342, 8
        %s344 = scalar_lea.vmem %s2, %s343
        %p345 = scmp.eq.s32.totalorder %s19, 0
        // Predicated region
        $region63: #{_bond_restraint_impl.1} parent=57 // pred_check
          %p346 = pneg %p345
        $region64: #{_bond_restraint_impl.1} parent=57 // pred_check_branch
          %348 = sbr.rel (%p346) target = $region66
        $region65: #{_bond_restraint_impl.1} parent=57 // pred_region
          %349 = vst [vmem:[%s340] sm:$0xff] 0.0
          %350 = vst [vmem:[%s344] sm:$0xff] 0.0
        $region66: #{_bond_restraint_impl.1} parent=57 // pred_fallthru
          _
        %s351 = sadd.s32 %s18, %s19
        %s352 = smul.u32 %s351, 4096
        %s353 = sadd.s32 %s352, 4096
        %p354 = scmp.le.s32.totalorder %s353, 30
        // Predicated region
        $region67: #{_bond_restraint_impl.1} parent=57 // pred_check
          %p355 = pneg %p354
        $region68: #{_bond_restraint_impl.1} parent=57 // pred_check_branch
          %357 = sbr.rel (%p355) target = $region70
        $region69: #{_bond_restraint_impl.1} parent=57 // pred_region
          %v358 = vld [vmem:[%s313] sm:$0xff]
          %v359 = vld [vmem:[%s313 + $0x8] sm:$0xff]
          %v360 = vld [vmem:[%s313 + $0x10] sm:$0xff]
          %v361 = vld [vmem:[%s313 + $0x18] sm:$0xff]
          %s362 = sadd.s32 0, 32
          %s363 = scalar_lea.vmem %s313, %s362 [#allocation2]
          %v364 = vld [vmem:[%s363] sm:$0xff]
          %v365 = vld [vmem:[%s363 + $0x8] sm:$0xff]
          %v366 = vld [vmem:[%s363 + $0x10] sm:$0xff]
          %v367 = vld [vmem:[%s363 + $0x18] sm:$0xff]
          %s368 = sadd.s32 0, 64
          %s369 = scalar_lea.vmem %s313, %s368 [#allocation2]
          %v370 = vld [vmem:[%s369] sm:$0xff]
          %v371 = vld [vmem:[%s369 + $0x8] sm:$0xff]
          %v372 = vld [vmem:[%s369 + $0x10] sm:$0xff]
          %v373 = vld [vmem:[%s369 + $0x18] sm:$0xff]
          %s374 = sadd.s32 0, 96
          %s375 = scalar_lea.vmem %s313, %s374 [#allocation2]
          %v376 = vld [vmem:[%s375] sm:$0xff]
          %v377 = vld [vmem:[%s375 + $0x8] sm:$0xff]
          %v378 = vld [vmem:[%s375 + $0x10] sm:$0xff]
          %v379 = vld [vmem:[%s375 + $0x18] sm:$0xff]
          %s380 = sadd.s32 0, 128
          %s381 = scalar_lea.vmem %s313, %s380 [#allocation2]
          %v382 = vld [vmem:[%s381] sm:$0xff]
          %v383 = vld [vmem:[%s381 + $0x8] sm:$0xff]
          %v384 = vld [vmem:[%s381 + $0x10] sm:$0xff]
          %v385 = vld [vmem:[%s381 + $0x18] sm:$0xff]
          %s386 = sadd.s32 0, 160
          %s387 = scalar_lea.vmem %s313, %s386 [#allocation2]
          %v388 = vld [vmem:[%s387] sm:$0xff]
          %v389 = vld [vmem:[%s387 + $0x8] sm:$0xff]
          %v390 = vld [vmem:[%s387 + $0x10] sm:$0xff]
          %v391 = vld [vmem:[%s387 + $0x18] sm:$0xff]
          %s392 = sadd.s32 0, 192
          %s393 = scalar_lea.vmem %s313, %s392 [#allocation2]
          %v394 = vld [vmem:[%s393] sm:$0xff]
          %v395 = vld [vmem:[%s393 + $0x8] sm:$0xff]
          %v396 = vld [vmem:[%s393 + $0x10] sm:$0xff]
          %v397 = vld [vmem:[%s393 + $0x18] sm:$0xff]
          %s398 = sadd.s32 0, 224
          %s399 = scalar_lea.vmem %s313, %s398 [#allocation2]
          %v400 = vld [vmem:[%s399] sm:$0xff]
          %v401 = vld [vmem:[%s399 + $0x8] sm:$0xff]
          %v402 = vld [vmem:[%s399 + $0x10] sm:$0xff]
          %v403 = vld [vmem:[%s399 + $0x18] sm:$0xff]
          %s404 = sadd.s32 0, 256
          %s405 = scalar_lea.vmem %s313, %s404 [#allocation2]
          %v406 = vld [vmem:[%s405] sm:$0xff]
          %v407 = vld [vmem:[%s405 + $0x8] sm:$0xff]
          %v408 = vld [vmem:[%s405 + $0x10] sm:$0xff]
          %v409 = vld [vmem:[%s405 + $0x18] sm:$0xff]
          %v410 = vmul.f32 %v358, %v358
          %v411 = vmul.f32 %v359, %v359
          %v412 = vmul.f32 %v360, %v360
          %v413 = vmul.f32 %v361, %v361
          %v414 = vmul.f32 %v364, %v364
          %v415 = vmul.f32 %v365, %v365
          %v416 = vmul.f32 %v366, %v366
          %v417 = vmul.f32 %v367, %v367
          %v418 = vadd.f32 %v410, %v414
          %v419 = vadd.f32 %v411, %v415
          %v420 = vadd.f32 %v412, %v416
          %v421 = vadd.f32 %v413, %v417
          %v422 = vmul.f32 %v370, %v370
          %v423 = vmul.f32 %v371, %v371
          %v424 = vmul.f32 %v372, %v372
          %v425 = vmul.f32 %v373, %v373
          %v426 = vadd.f32 %v418, %v422
          %v427 = vadd.f32 %v419, %v423
          %v428 = vadd.f32 %v420, %v424
          %v429 = vadd.f32 %v421, %v425
          %v430 = vmul.f32 %v376, %v358
          %v431 = vmul.f32 %v377, %v359
          %v432 = vmul.f32 %v378, %v360
          %v433 = vmul.f32 %v379, %v361
          %v434 = vmul.f32 %v382, %v364
          %v435 = vmul.f32 %v383, %v365
          %v436 = vmul.f32 %v384, %v366
          %v437 = vmul.f32 %v385, %v367
          %v438 = vadd.f32 %v430, %v434
          %v439 = vadd.f32 %v431, %v435
          %v440 = vadd.f32 %v432, %v436
          %v441 = vadd.f32 %v433, %v437
          %v442 = vmul.f32 %v388, %v370
          %v443 = vmul.f32 %v389, %v371
          %v444 = vmul.f32 %v390, %v372
          %v445 = vmul.f32 %v391, %v373
          %v446 = vadd.f32 %v438, %v442
          %v447 = vadd.f32 %v439, %v443
          %v448 = vadd.f32 %v440, %v444
          %v449 = vadd.f32 %v441, %v445
          %v450 = vmul.f32 %v394, %v358
          %v451 = vmul.f32 %v395, %v359
          %v452 = vmul.f32 %v396, %v360
          %v453 = vmul.f32 %v397, %v361
          %v454 = vmul.f32 %v400, %v364
          %v455 = vmul.f32 %v401, %v365
          %v456 = vmul.f32 %v402, %v366
          %v457 = vmul.f32 %v403, %v367
          %v458 = vadd.f32 %v450, %v454
          %v459 = vadd.f32 %v451, %v455
          %v460 = vadd.f32 %v452, %v456
          %v461 = vadd.f32 %v453, %v457
          %v462 = vmul.f32 %v406, %v370
          %v463 = vmul.f32 %v407, %v371
          %v464 = vmul.f32 %v408, %v372
          %v465 = vmul.f32 %v409, %v373
          %v466 = vadd.f32 %v458, %v462
          %v467 = vadd.f32 %v459, %v463
          %v468 = vadd.f32 %v460, %v464
          %v469 = vadd.f32 %v461, %v465
          %v470 = vmul.f32 %v376, %v394
          %v471 = vmul.f32 %v377, %v395
          %v472 = vmul.f32 %v378, %v396
          %v473 = vmul.f32 %v379, %v397
          %v474 = vmul.f32 %v382, %v400
          %v475 = vmul.f32 %v383, %v401
          %v476 = vmul.f32 %v384, %v402
          %v477 = vmul.f32 %v385, %v403
          %v478 = vadd.f32 %v470, %v474
          %v479 = vadd.f32 %v471, %v475
          %v480 = vadd.f32 %v472, %v476
          %v481 = vadd.f32 %v473, %v477
          %v482 = vmul.f32 %v388, %v406
          %v483 = vmul.f32 %v389, %v407
          %v484 = vmul.f32 %v390, %v408
          %v485 = vmul.f32 %v391, %v409
          %v486 = vadd.f32 %v478, %v482
          %v487 = vadd.f32 %v479, %v483
          %v488 = vadd.f32 %v480, %v484
          %v489 = vadd.f32 %v481, %v485
          %v490 = vmul.f32 %v382, %v370
          %v491 = vmul.f32 %v383, %v371
          %v492 = vmul.f32 %v384, %v372
          %v493 = vmul.f32 %v385, %v373
          %v494 = vmul.f32 %v388, %v364
          %v495 = vmul.f32 %v389, %v365
          %v496 = vmul.f32 %v390, %v366
          %v497 = vmul.f32 %v391, %v367
          %v498 = vsub.f32 %v490, %v494
          %v499 = vsub.f32 %v491, %v495
          %v500 = vsub.f32 %v492, %v496
          %v501 = vsub.f32 %v493, %v497
          %v502 = vmul.f32 %v388, %v358
          %v503 = vmul.f32 %v389, %v359
          %v504 = vmul.f32 %v390, %v360
          %v505 = vmul.f32 %v391, %v361
          %v506 = vmul.f32 %v376, %v370
          %v507 = vmul.f32 %v377, %v371
          %v508 = vmul.f32 %v378, %v372
          %v509 = vmul.f32 %v379, %v373
          %v510 = vsub.f32 %v502, %v506
          %v511 = vsub.f32 %v503, %v507
          %v512 = vsub.f32 %v504, %v508
          %v513 = vsub.f32 %v505, %v509
          %v514 = vmul.f32 %v376, %v364
          %v515 = vmul.f32 %v377, %v365
          %v516 = vmul.f32 %v378, %v366
          %v517 = vmul.f32 %v379, %v367
          %v518 = vmul.f32 %v382, %v358
          %v519 = vmul.f32 %v383, %v359
          %v520 = vmul.f32 %v384, %v360
          %v521 = vmul.f32 %v385, %v361
          %v522 = vsub.f32 %v514, %v518
          %v523 = vsub.f32 %v515, %v519
          %v524 = vsub.f32 %v516, %v520
          %v525 = vsub.f32 %v517, %v521
          %v526 = vmul.f32 %v364, %v406
          %v527 = vmul.f32 %v365, %v407
          %v528 = vmul.f32 %v366, %v408
          %v529 = vmul.f32 %v367, %v409
          %v530 = vmul.f32 %v370, %v400
          %v531 = vmul.f32 %v371, %v401
          %v532 = vmul.f32 %v372, %v402
          %v533 = vmul.f32 %v373, %v403
          %v534 = vsub.f32 %v526, %v530
          %v535 = vsub.f32 %v527, %v531
          %v536 = vsub.f32 %v528, %v532
          %v537 = vsub.f32 %v529, %v533
          %v538 = vmul.f32 %v370, %v394
          %v539 = vmul.f32 %v371, %v395
          %v540 = vmul.f32 %v372, %v396
          %v541 = vmul.f32 %v373, %v397
          %v542 = vmul.f32 %v358, %v406
          %v543 = vmul.f32 %v359, %v407
          %v544 = vmul.f32 %v360, %v408
          %v545 = vmul.f32 %v361, %v409
          %v546 = vsub.f32 %v538, %v542
          %v547 = vsub.f32 %v539, %v543
          %v548 = vsub.f32 %v540, %v544
          %v549 = vsub.f32 %v541, %v545
          %v550 = vmul.f32 %v358, %v400
          %v551 = vmul.f32 %v359, %v401
          %v552 = vmul.f32 %v360, %v402
          %v553 = vmul.f32 %v361, %v403
          %v554 = vmul.f32 %v364, %v394
          %v555 = vmul.f32 %v365, %v395
          %v556 = vmul.f32 %v366, %v396
          %v557 = vmul.f32 %v367, %v397
          %v558 = vsub.f32 %v550, %v554
          %v559 = vsub.f32 %v551, %v555
          %v560 = vsub.f32 %v552, %v556
          %v561 = vsub.f32 %v553, %v557
          %v562 = vmul.f32 %v498, %v498
          %v563 = vmul.f32 %v499, %v499
          %v564 = vmul.f32 %v500, %v500
          %v565 = vmul.f32 %v501, %v501
          %v566 = vmul.f32 %v510, %v510
          %v567 = vmul.f32 %v511, %v511
          %v568 = vmul.f32 %v512, %v512
          %v569 = vmul.f32 %v513, %v513
          %v570 = vadd.f32 %v562, %v566
          %v571 = vadd.f32 %v563, %v567
          %v572 = vadd.f32 %v564, %v568
          %v573 = vadd.f32 %v565, %v569
          %v574 = vmul.f32 %v522, %v522
          %v575 = vmul.f32 %v523, %v523
          %v576 = vmul.f32 %v524, %v524
          %v577 = vmul.f32 %v525, %v525
          %v578 = vadd.f32 %v570, %v574
          %v579 = vadd.f32 %v571, %v575
          %v580 = vadd.f32 %v572, %v576
          %v581 = vadd.f32 %v573, %v577
          %v582 = vmul.f32 %v534, %v534
          %v583 = vmul.f32 %v535, %v535
          %v584 = vmul.f32 %v536, %v536
          %v585 = vmul.f32 %v537, %v537
          %v586 = vmul.f32 %v546, %v546
          %v587 = vmul.f32 %v547, %v547
          %v588 = vmul.f32 %v548, %v548
          %v589 = vmul.f32 %v549, %v549
          %v590 = vadd.f32 %v582, %v586
          %v591 = vadd.f32 %v583, %v587
          %v592 = vadd.f32 %v584, %v588
          %v593 = vadd.f32 %v585, %v589
          %v594 = vmul.f32 %v558, %v558
          %v595 = vmul.f32 %v559, %v559
          %v596 = vmul.f32 %v560, %v560
          %v597 = vmul.f32 %v561, %v561
          %v598 = vadd.f32 %v590, %v594
          %v599 = vadd.f32 %v591, %v595
          %v600 = vadd.f32 %v592, %v596
          %v601 = vadd.f32 %v593, %v597
          %v602 = vmul.f32 %v498, %v394
          %v603 = vmul.f32 %v499, %v395
          %v604 = vmul.f32 %v500, %v396
          %v605 = vmul.f32 %v501, %v397
          %v606 = vmul.f32 %v510, %v400
          %v607 = vmul.f32 %v511, %v401
          %v608 = vmul.f32 %v512, %v402
          %v609 = vmul.f32 %v513, %v403
          %v610 = vadd.f32 %v602, %v606
          %v611 = vadd.f32 %v603, %v607
          %v612 = vadd.f32 %v604, %v608
          %v613 = vadd.f32 %v605, %v609
          %v614 = vmul.f32 %v522, %v406
          %v615 = vmul.f32 %v523, %v407
          %v616 = vmul.f32 %v524, %v408
          %v617 = vmul.f32 %v525, %v409
          %v618 = vadd.f32 %v610, %v614
          %v619 = vadd.f32 %v611, %v615
          %v620 = vadd.f32 %v612, %v616
          %v621 = vadd.f32 %v613, %v617
          %v622 = vrsqrt.pop %v426
          %v623 = vmul.f32 %v426, %v622
          %vm624 = vcmp.eq.f32.partialorder %v426, inf
          %v625 = vsel %vm624, %v426, %v623
          %vm626 = vcmp.eq.f32.partialorder %v426, 0.0
          %v627 = vand.u32 %v426, 2147483648
          %v628 = vsel %vm626, %v627, %v625
          %v629 = vrsqrt.pop %v427
          %v630 = vmul.f32 %v427, %v629
          %vm631 = vcmp.eq.f32.partialorder %v427, inf
          %v632 = vsel %vm631, %v427, %v630
          %vm633 = vcmp.eq.f32.partialorder %v427, 0.0
          %v634 = vand.u32 %v427, 2147483648
          %v635 = vsel %vm633, %v634, %v632
          %v636 = vrsqrt.pop %v428
          %v637 = vmul.f32 %v428, %v636
          %vm638 = vcmp.eq.f32.partialorder %v428, inf
          %v639 = vsel %vm638, %v428, %v637
          %vm640 = vcmp.eq.f32.partialorder %v428, 0.0
          %v641 = vand.u32 %v428, 2147483648
          %v642 = vsel %vm640, %v641, %v639
          %v643 = vrsqrt.pop %v429
          %v644 = vmul.f32 %v429, %v643
          %vm645 = vcmp.eq.f32.partialorder %v429, inf
          %v646 = vsel %vm645, %v429, %v644
          %vm647 = vcmp.eq.f32.partialorder %v429, 0.0
          %v648 = vand.u32 %v429, 2147483648
          %v649 = vsel %vm647, %v648, %v646
          %v650 = vsub.f32 %v628, 1.329
          %v651 = vsub.f32 %v635, 1.329
          %v652 = vsub.f32 %v642, 1.329
          %v653 = vsub.f32 %v649, 1.329
          %v654 = vmul.f32 %v650, %v650
          %v655 = vmul.f32 %v651, %v651
          %v656 = vmul.f32 %v652, %v652
          %v657 = vmul.f32 %v653, %v653
          %v658 = vmul.f32 %v654, 50.0
          %v659 = vmul.f32 %v655, 50.0
          %v660 = vmul.f32 %v656, 50.0
          %v661 = vmul.f32 %v657, 50.0
          %v662 = vrsqrt.pop %v578
          %v663 = vmul.f32 %v578, %v662
          %vm664 = vcmp.eq.f32.partialorder %v578, inf
          %v665 = vsel %vm664, %v578, %v663
          %vm666 = vcmp.eq.f32.partialorder %v578, 0.0
          %v667 = vand.u32 %v578, 2147483648
          %v668 = vsel %vm666, %v667, %v665
          %v669 = vrsqrt.pop %v579
          %v670 = vmul.f32 %v579, %v669
          %vm671 = vcmp.eq.f32.partialorder %v579, inf
          %v672 = vsel %vm671, %v579, %v670
          %vm673 = vcmp.eq.f32.partialorder %v579, 0.0
          %v674 = vand.u32 %v579, 2147483648
          %v675 = vsel %vm673, %v674, %v672
          %v676 = vrsqrt.pop %v580
          %v677 = vmul.f32 %v580, %v676
          %vm678 = vcmp.eq.f32.partialorder %v580, inf
          %v679 = vsel %vm678, %v580, %v677
          %vm680 = vcmp.eq.f32.partialorder %v580, 0.0
          %v681 = vand.u32 %v580, 2147483648
          %v682 = vsel %vm680, %v681, %v679
          %v683 = vrsqrt.pop %v581
          %v684 = vmul.f32 %v581, %v683
          %vm685 = vcmp.eq.f32.partialorder %v581, inf
          %v686 = vsel %vm685, %v581, %v684
          %vm687 = vcmp.eq.f32.partialorder %v581, 0.0
          %v688 = vand.u32 %v581, 2147483648
          %v689 = vsel %vm687, %v688, %v686
          %v690 = vand.u32 2147483647, %v446
          %v691 = vand.u32 2147483647, %v447
          %v692 = vand.u32 2147483647, %v448
          %v693 = vand.u32 2147483647, %v449
          %v694 = vmin.f32 %v668, %v690
          %v695 = vmin.f32 %v675, %v691
          %v696 = vmin.f32 %v682, %v692
          %v697 = vmin.f32 %v689, %v693
          %v698 = vmax.f32 %v668, %v690
          %v699 = vmax.f32 %v675, %v691
          %v700 = vmax.f32 %v682, %v692
          %v701 = vmax.f32 %v689, %v693
          %v702 = vmax.f32 %v698, 1e-37
          %v703 = vmax.f32 %v699, 1e-37
          %v704 = vmax.f32 %v700, 1e-37
          %v705 = vmax.f32 %v701, 1e-37
          %v706 = vrcp.pop %v702
          %v707 = vrcp.pop %v703
          %v708 = vrcp.pop %v704
          %v709 = vrcp.pop %v705
          %v710 = vmul.f32 %v702, %v706
          %v711 = vmul.f32 %v703, %v707
          %v712 = vmul.f32 %v704, %v708
          %v713 = vmul.f32 %v705, %v709
          %v714 = vsub.f32 2.0, %v710
          %v715 = vsub.f32 2.0, %v711
          %v716 = vsub.f32 2.0, %v712
          %v717 = vsub.f32 2.0, %v713
          %v718 = vmul.f32 %v706, %v714
          %v719 = vmul.f32 %v707, %v715
          %v720 = vmul.f32 %v708, %v716
          %v721 = vmul.f32 %v709, %v717
          %v722 = vmul.f32 %v694, %v718
          %v723 = vmul.f32 %v695, %v719
          %v724 = vmul.f32 %v696, %v720
          %v725 = vmul.f32 %v697, %v721
          %vm726 = vcmp.gt.f32.partialorder %v722, 0.41421357
          %vm727 = vcmp.gt.f32.partialorder %v723, 0.41421357
          %vm728 = vcmp.gt.f32.partialorder %v724, 0.41421357
          %vm729 = vcmp.gt.f32.partialorder %v725, 0.41421357
          %v730 = vsub.f32 %v722, 1.0
          %v731 = vsub.f32 %v723, 1.0
          %v732 = vsub.f32 %v724, 1.0
          %v733 = vsub.f32 %v725, 1.0
          %v734 = vsel %vm726, %v730, %v722
          %v735 = vsel %vm727, %v731, %v723
          %v736 = vsel %vm728, %v732, %v724
          %v737 = vsel %vm729, %v733, %v725
          %v738 = vadd.f32 %v722, 1.0
          %v739 = vadd.f32 %v723, 1.0
          %v740 = vadd.f32 %v724, 1.0
          %v741 = vadd.f32 %v725, 1.0
          %v742 = vsel %vm726, %v738, 1.0
          %v743 = vsel %vm727, %v739, 1.0
          %v744 = vsel %vm728, %v740, 1.0
          %v745 = vsel %vm729, %v741, 1.0
          %v746 = vrcp.pop %v742
          %v747 = vrcp.pop %v743
          %v748 = vrcp.pop %v744
          %v749 = vrcp.pop %v745
          %v750 = vmul.f32 %v742, %v746
          %v751 = vmul.f32 %v743, %v747
          %v752 = vmul.f32 %v744, %v748
          %v753 = vmul.f32 %v745, %v749
          %v754 = vsub.f32 2.0, %v750
          %v755 = vsub.f32 2.0, %v751
          %v756 = vsub.f32 2.0, %v752
          %v757 = vsub.f32 2.0, %v753
          %v758 = vmul.f32 %v746, %v754
          %v759 = vmul.f32 %v747, %v755
          %v760 = vmul.f32 %v748, %v756
          %v761 = vmul.f32 %v749, %v757
          %v762 = vmul.f32 %v734, %v758
          %v763 = vmul.f32 %v735, %v759
          %v764 = vmul.f32 %v736, %v760
          %v765 = vmul.f32 %v737, %v761
          %v766 = vsel %vm726, 0.7853982, 0.0
          %v767 = vsel %vm727, 0.7853982, 0.0
          %v768 = vsel %vm728, 0.7853982, 0.0
          %v769 = vsel %vm729, 0.7853982, 0.0
          %v770 = vmul.f32 %v762, %v762
          %v771 = vmul.f32 %v763, %v763
          %v772 = vmul.f32 %v764, %v764
          %v773 = vmul.f32 %v765, %v765
          %v774 = vmul.f32 %v770, 0.080537446
          %v775 = vmul.f32 %v771, 0.080537446
          %v776 = vmul.f32 %v772, 0.080537446
          %v777 = vmul.f32 %v773, 0.080537446
          %v778 = vsub.f32 %v774, 0.13877685
          %v779 = vsub.f32 %v775, 0.13877685
          %v780 = vsub.f32 %v776, 0.13877685
          %v781 = vsub.f32 %v777, 0.13877685
          %v782 = vmul.f32 %v778, %v770
          %v783 = vmul.f32 %v779, %v771
          %v784 = vmul.f32 %v780, %v772
          %v785 = vmul.f32 %v781, %v773
          %v786 = vadd.f32 %v782, 0.19977711
          %v787 = vadd.f32 %v783, 0.19977711
          %v788 = vadd.f32 %v784, 0.19977711
          %v789 = vadd.f32 %v785, 0.19977711
          %v790 = vmul.f32 %v786, %v770
          %v791 = vmul.f32 %v787, %v771
          %v792 = vmul.f32 %v788, %v772
          %v793 = vmul.f32 %v789, %v773
          %v794 = vsub.f32 %v790, 0.3333295
          %v795 = vsub.f32 %v791, 0.3333295
          %v796 = vsub.f32 %v792, 0.3333295
          %v797 = vsub.f32 %v793, 0.3333295
          %v798 = vadd.f32 %v766, %v762
          %v799 = vadd.f32 %v767, %v763
          %v800 = vadd.f32 %v768, %v764
          %v801 = vadd.f32 %v769, %v765
          %v802 = vmul.f32 %v762, %v770
          %v803 = vmul.f32 %v763, %v771
          %v804 = vmul.f32 %v764, %v772
          %v805 = vmul.f32 %v765, %v773
          %v806 = vmul.f32 %v802, %v794
          %v807 = vmul.f32 %v803, %v795
          %v808 = vmul.f32 %v804, %v796
          %v809 = vmul.f32 %v805, %v797
          %v810 = vadd.f32 %v798, %v806
          %v811 = vadd.f32 %v799, %v807
          %v812 = vadd.f32 %v800, %v808
          %v813 = vadd.f32 %v801, %v809
          %vm814 = vcmp.gt.f32.partialorder %v668, %v690
          %vm815 = vcmp.gt.f32.partialorder %v675, %v691
          %vm816 = vcmp.gt.f32.partialorder %v682, %v692
          %vm817 = vcmp.gt.f32.partialorder %v689, %v693
          %v818 = vsub.f32 1.5707964, %v810
          %v819 = vsub.f32 1.5707964, %v811
          %v820 = vsub.f32 1.5707964, %v812
          %v821 = vsub.f32 1.5707964, %v813
          %v822 = vsel %vm814, %v818, %v810
          %v823 = vsel %vm815, %v819, %v811
          %v824 = vsel %vm816, %v820, %v812
          %v825 = vsel %vm817, %v821, %v813
          %vm826 = vcmp.lt.f32.partialorder %v446, 0.0
          %vm827 = vcmp.lt.f32.partialorder %v447, 0.0
          %vm828 = vcmp.lt.f32.partialorder %v448, 0.0
          %vm829 = vcmp.lt.f32.partialorder %v449, 0.0
          %v830 = vsub.f32 3.1415927, %v822
          %v831 = vsub.f32 3.1415927, %v823
          %v832 = vsub.f32 3.1415927, %v824
          %v833 = vsub.f32 3.1415927, %v825
          %v834 = vsel %vm826, %v830, %v822
          %v835 = vsel %vm827, %v831, %v823
          %v836 = vsel %vm828, %v832, %v824
          %v837 = vsel %vm829, %v833, %v825
          %v838 = vrsqrt.pop %v598
          %v839 = vmul.f32 %v598, %v838
          %vm840 = vcmp.eq.f32.partialorder %v598, inf
          %v841 = vsel %vm840, %v598, %v839
          %vm842 = vcmp.eq.f32.partialorder %v598, 0.0
          %v843 = vand.u32 %v598, 2147483648
          %v844 = vsel %vm842, %v843, %v841
          %v845 = vrsqrt.pop %v599
          %v846 = vmul.f32 %v599, %v845
          %vm847 = vcmp.eq.f32.partialorder %v599, inf
          %v848 = vsel %vm847, %v599, %v846
          %vm849 = vcmp.eq.f32.partialorder %v599, 0.0
          %v850 = vand.u32 %v599, 2147483648
          %v851 = vsel %vm849, %v850, %v848
          %v852 = vrsqrt.pop %v600
          %v853 = vmul.f32 %v600, %v852
          %vm854 = vcmp.eq.f32.partialorder %v600, inf
          %v855 = vsel %vm854, %v600, %v853
          %vm856 = vcmp.eq.f32.partialorder %v600, 0.0
          %v857 = vand.u32 %v600, 2147483648
          %v858 = vsel %vm856, %v857, %v855
          %v859 = vrsqrt.pop %v601
          %v860 = vmul.f32 %v601, %v859
          %vm861 = vcmp.eq.f32.partialorder %v601, inf
          %v862 = vsel %vm861, %v601, %v860
          %vm863 = vcmp.eq.f32.partialorder %v601, 0.0
          %v864 = vand.u32 %v601, 2147483648
          %v865 = vsel %vm863, %v864, %v862
          %v866 = vsub.f32 0.0, %v466
          %v867 = vsub.f32 0.0, %v467
          %v868 = vsub.f32 0.0, %v468
          %v869 = vsub.f32 0.0, %v469
          %v870 = vand.u32 2147483647, %v866
          %v871 = vand.u32 2147483647, %v867
          %v872 = vand.u32 2147483647, %v868
          %v873 = vand.u32 2147483647, %v869
          %v874 = vmin.f32 %v844, %v870
          %v875 = vmin.f32 %v851, %v871
          %v876 = vmin.f32 %v858, %v872
          %v877 = vmin.f32 %v865, %v873
          %v878 = vmax.f32 %v844, %v870
          %v879 = vmax.f32 %v851, %v871
          %v880 = vmax.f32 %v858, %v872
          %v881 = vmax.f32 %v865, %v873
          %v882 = vmax.f32 %v878, 1e-37
          %v883 = vmax.f32 %v879, 1e-37
          %v884 = vmax.f32 %v880, 1e-37
          %v885 = vmax.f32 %v881, 1e-37
          %v886 = vrcp.pop %v882
          %v887 = vrcp.pop %v883
          %v888 = vrcp.pop %v884
          %v889 = vrcp.pop %v885
          %v890 = vmul.f32 %v882, %v886
          %v891 = vmul.f32 %v883, %v887
          %v892 = vmul.f32 %v884, %v888
          %v893 = vmul.f32 %v885, %v889
          %v894 = vsub.f32 2.0, %v890
          %v895 = vsub.f32 2.0, %v891
          %v896 = vsub.f32 2.0, %v892
          %v897 = vsub.f32 2.0, %v893
          %v898 = vmul.f32 %v886, %v894
          %v899 = vmul.f32 %v887, %v895
          %v900 = vmul.f32 %v888, %v896
          %v901 = vmul.f32 %v889, %v897
          %v902 = vmul.f32 %v874, %v898
          %v903 = vmul.f32 %v875, %v899
          %v904 = vmul.f32 %v876, %v900
          %v905 = vmul.f32 %v877, %v901
          %vm906 = vcmp.gt.f32.partialorder %v902, 0.41421357
          %vm907 = vcmp.gt.f32.partialorder %v903, 0.41421357
          %vm908 = vcmp.gt.f32.partialorder %v904, 0.41421357
          %vm909 = vcmp.gt.f32.partialorder %v905, 0.41421357
          %v910 = vsub.f32 %v902, 1.0
          %v911 = vsub.f32 %v903, 1.0
          %v912 = vsub.f32 %v904, 1.0
          %v913 = vsub.f32 %v905, 1.0
          %v914 = vsel %vm906, %v910, %v902
          %v915 = vsel %vm907, %v911, %v903
          %v916 = vsel %vm908, %v912, %v904
          %v917 = vsel %vm909, %v913, %v905
          %v918 = vadd.f32 %v902, 1.0
          %v919 = vadd.f32 %v903, 1.0
          %v920 = vadd.f32 %v904, 1.0
          %v921 = vadd.f32 %v905, 1.0
          %v922 = vsel %vm906, %v918, 1.0
          %v923 = vsel %vm907, %v919, 1.0
          %v924 = vsel %vm908, %v920, 1.0
          %v925 = vsel %vm909, %v921, 1.0
          %v926 = vrcp.pop %v922
          %v927 = vrcp.pop %v923
          %v928 = vrcp.pop %v924
          %v929 = vrcp.pop %v925
          %v930 = vmul.f32 %v922, %v926
          %v931 = vmul.f32 %v923, %v927
          %v932 = vmul.f32 %v924, %v928
          %v933 = vmul.f32 %v925, %v929
          %v934 = vsub.f32 2.0, %v930
          %v935 = vsub.f32 2.0, %v931
          %v936 = vsub.f32 2.0, %v932
          %v937 = vsub.f32 2.0, %v933
          %v938 = vmul.f32 %v926, %v934
          %v939 = vmul.f32 %v927, %v935
          %v940 = vmul.f32 %v928, %v936
          %v941 = vmul.f32 %v929, %v937
          %v942 = vmul.f32 %v914, %v938
          %v943 = vmul.f32 %v915, %v939
          %v944 = vmul.f32 %v916, %v940
          %v945 = vmul.f32 %v917, %v941
          %v946 = vsel %vm906, 0.7853982, 0.0
          %v947 = vsel %vm907, 0.7853982, 0.0
          %v948 = vsel %vm908, 0.7853982, 0.0
          %v949 = vsel %vm909, 0.7853982, 0.0
          %v950 = vmul.f32 %v942, %v942
          %v951 = vmul.f32 %v943, %v943
          %v952 = vmul.f32 %v944, %v944
          %v953 = vmul.f32 %v945, %v945
          %v954 = vmul.f32 %v950, 0.080537446
          %v955 = vmul.f32 %v951, 0.080537446
          %v956 = vmul.f32 %v952, 0.080537446
          %v957 = vmul.f32 %v953, 0.080537446
          %v958 = vsub.f32 %v954, 0.13877685
          %v959 = vsub.f32 %v955, 0.13877685
          %v960 = vsub.f32 %v956, 0.13877685
          %v961 = vsub.f32 %v957, 0.13877685
          %v962 = vmul.f32 %v958, %v950
          %v963 = vmul.f32 %v959, %v951
          %v964 = vmul.f32 %v960, %v952
          %v965 = vmul.f32 %v961, %v953
          %v966 = vadd.f32 %v962, 0.19977711
          %v967 = vadd.f32 %v963, 0.19977711
          %v968 = vadd.f32 %v964, 0.19977711
          %v969 = vadd.f32 %v965, 0.19977711
          %v970 = vmul.f32 %v966, %v950
          %v971 = vmul.f32 %v967, %v951
          %v972 = vmul.f32 %v968, %v952
          %v973 = vmul.f32 %v969, %v953
          %v974 = vsub.f32 %v970, 0.3333295
          %v975 = vsub.f32 %v971, 0.3333295
          %v976 = vsub.f32 %v972, 0.3333295
          %v977 = vsub.f32 %v973, 0.3333295
          %v978 = vadd.f32 %v946, %v942
          %v979 = vadd.f32 %v947, %v943
          %v980 = vadd.f32 %v948, %v944
          %v981 = vadd.f32 %v949, %v945
          %v982 = vmul.f32 %v942, %v950
          %v983 = vmul.f32 %v943, %v951
          %v984 = vmul.f32 %v944, %v952
          %v985 = vmul.f32 %v945, %v953
          %v986 = vmul.f32 %v982, %v974
          %v987 = vmul.f32 %v983, %v975
          %v988 = vmul.f32 %v984, %v976
          %v989 = vmul.f32 %v985, %v977
          %v990 = vadd.f32 %v978, %v986
          %v991 = vadd.f32 %v979, %v987
          %v992 = vadd.f32 %v980, %v988
          %v993 = vadd.f32 %v981, %v989
          %vm994 = vcmp.gt.f32.partialorder %v844, %v870
          %vm995 = vcmp.gt.f32.partialorder %v851, %v871
          %vm996 = vcmp.gt.f32.partialorder %v858, %v872
          %vm997 = vcmp.gt.f32.partialorder %v865, %v873
          %v998 = vsub.f32 1.5707964, %v990
          %v999 = vsub.f32 1.5707964, %v991
          %v1000 = vsub.f32 1.5707964, %v992
          %v1001 = vsub.f32 1.5707964, %v993
          %v1002 = vsel %vm994, %v998, %v990
          %v1003 = vsel %vm995, %v999, %v991
          %v1004 = vsel %vm996, %v1000, %v992
          %v1005 = vsel %vm997, %v1001, %v993
          %vm1006 = vcmp.lt.f32.partialorder %v866, 0.0
          %vm1007 = vcmp.lt.f32.partialorder %v867, 0.0
          %vm1008 = vcmp.lt.f32.partialorder %v868, 0.0
          %vm1009 = vcmp.lt.f32.partialorder %v869, 0.0
          %v1010 = vsub.f32 3.1415927, %v1002
          %v1011 = vsub.f32 3.1415927, %v1003
          %v1012 = vsub.f32 3.1415927, %v1004
          %v1013 = vsub.f32 3.1415927, %v1005
          %v1014 = vsel %vm1006, %v1010, %v1002
          %v1015 = vsel %vm1007, %v1011, %v1003
          %v1016 = vsel %vm1008, %v1012, %v1004
          %v1017 = vsel %vm1009, %v1013, %v1005
          %v1018 = vmul.f32 %v486, %v426
          %v1019 = vmul.f32 %v487, %v427
          %v1020 = vmul.f32 %v488, %v428
          %v1021 = vmul.f32 %v489, %v429
          %v1022 = vmul.f32 %v446, %v466
          %v1023 = vmul.f32 %v447, %v467
          %v1024 = vmul.f32 %v448, %v468
          %v1025 = vmul.f32 %v449, %v469
          %v1026 = vsub.f32 %v1018, %v1022
          %v1027 = vsub.f32 %v1019, %v1023
          %v1028 = vsub.f32 %v1020, %v1024
          %v1029 = vsub.f32 %v1021, %v1025
          %v1030 = vmul.f32 %v618, %v618
          %v1031 = vmul.f32 %v619, %v619
          %v1032 = vmul.f32 %v620, %v620
          %v1033 = vmul.f32 %v621, %v621
          %v1034 = vmul.f32 %v1030, %v426
          %v1035 = vmul.f32 %v1031, %v427
          %v1036 = vmul.f32 %v1032, %v428
          %v1037 = vmul.f32 %v1033, %v429
          %v1038 = vmul.f32 %v1026, %v1026
          %v1039 = vmul.f32 %v1027, %v1027
          %v1040 = vmul.f32 %v1028, %v1028
          %v1041 = vmul.f32 %v1029, %v1029
          %v1042 = vadd.f32 %v1038, %v1034
          %v1043 = vadd.f32 %v1039, %v1035
          %v1044 = vadd.f32 %v1040, %v1036
          %v1045 = vadd.f32 %v1041, %v1037
          %v1046 = vmax.f32 %v1042, 1e-37
          %v1047 = vmax.f32 %v1043, 1e-37
          %v1048 = vmax.f32 %v1044, 1e-37
          %v1049 = vmax.f32 %v1045, 1e-37
          %v1050 = vrsqrt.pop %v1046
          %v1051 = vrsqrt.pop %v1047
          %v1052 = vrsqrt.pop %v1048
          %v1053 = vrsqrt.pop %v1049
          %vm1054 = vcmp.gt.f32.partialorder %v1042, 0.0
          %vm1055 = vcmp.gt.f32.partialorder %v1043, 0.0
          %vm1056 = vcmp.gt.f32.partialorder %v1044, 0.0
          %vm1057 = vcmp.gt.f32.partialorder %v1045, 0.0
          %v1058 = vmul.f32 %v1026, %v1050
          %v1059 = vmul.f32 %v1027, %v1051
          %v1060 = vmul.f32 %v1028, %v1052
          %v1061 = vmul.f32 %v1029, %v1053
          %v1062 = vsel %vm1054, %v1058, 1.0
          %v1063 = vsel %vm1055, %v1059, 1.0
          %v1064 = vsel %vm1056, %v1060, 1.0
          %v1065 = vsel %vm1057, %v1061, 1.0
          %v1066 = vsub.f32 %v834, 2.0280726
          %v1067 = vsub.f32 %v835, 2.0280726
          %v1068 = vsub.f32 %v836, 2.0280726
          %v1069 = vsub.f32 %v837, 2.0280726
          %v1070 = vmul.f32 %v1066, %v1066
          %v1071 = vmul.f32 %v1067, %v1067
          %v1072 = vmul.f32 %v1068, %v1068
          %v1073 = vmul.f32 %v1069, %v1069
          %v1074 = vsub.f32 %v1014, 2.1240656
          %v1075 = vsub.f32 %v1015, 2.1240656
          %v1076 = vsub.f32 %v1016, 2.1240656
          %v1077 = vsub.f32 %v1017, 2.1240656
          %v1078 = vmul.f32 %v1074, %v1074
          %v1079 = vmul.f32 %v1075, %v1075
          %v1080 = vmul.f32 %v1076, %v1076
          %v1081 = vmul.f32 %v1077, %v1077
          %v1082 = vadd.f32 %v1070, %v1078
          %v1083 = vadd.f32 %v1071, %v1079
          %v1084 = vadd.f32 %v1072, %v1080
          %v1085 = vadd.f32 %v1073, %v1081
          %v1086 = vmul.f32 %v1082, 50.0
          %v1087 = vmul.f32 %v1083, 50.0
          %v1088 = vmul.f32 %v1084, 50.0
          %v1089 = vmul.f32 %v1085, 50.0
          %v1090 = vmul.f32 %v1062, 100.0
          %v1091 = vmul.f32 %v1063, 100.0
          %v1092 = vmul.f32 %v1064, 100.0
          %v1093 = vmul.f32 %v1065, 100.0
          %v1094 = vadd.f32 %v1086, %v1090
          %v1095 = vadd.f32 %v1087, %v1091
          %v1096 = vadd.f32 %v1088, %v1092
          %v1097 = vadd.f32 %v1089, %v1093
          %v1098 = vadd.f32 %v658, %v659
          %v1099 = vadd.f32 %v1098, %v660
          %v1100 = vadd.f32 %v1099, %v661
          %v1101 = vadd.f32 %v1100, 0.0
          %v1102 = vadd.f32 %v1094, %v1095
          %v1103 = vadd.f32 %v1102, %v1096
          %v1104 = vadd.f32 %v1103, %v1097
          %v1105 = vadd.f32 %v1104, 0.0
          %v1106 = vld [vmem:[%s340] sm:$0xff]
          %v1107 = vadd.f32 %v1106, %v1101
          %1108 = vst [vmem:[%s340] sm:$0xff] %v1107
          %v1109 = vld [vmem:[%s344] sm:$0xff]
          %v1110 = vadd.f32 %v1109, %v1105
          %1111 = vst [vmem:[%s344] sm:$0xff] %v1110
        $region70: #{_bond_restraint_impl.1} parent=57 // pred_fallthru
          _
        %p1112 = scmp.gt.s32.totalorder %s353, 30
        // Predicated region
        $region71: #{_bond_restraint_impl.1} parent=57 // pred_check
          %p1113 = pneg %p1112
        $region72: #{_bond_restraint_impl.1} parent=57 // pred_check_branch
          %1115 = sbr.rel (%p1113) target = $region74
        $region73: #{_bond_restraint_impl.1} parent=57 // pred_region
          %v1116 = vld [vmem:[%s313] sm:$0xff]
          %v1117 = vld [vmem:[%s313 + $0x8] sm:$0xff]
          %v1118 = vld [vmem:[%s313 + $0x10] sm:$0xff]
          %v1119 = vld [vmem:[%s313 + $0x18] sm:$0xff]
          %s1120 = sadd.s32 0, 32
          %s1121 = scalar_lea.vmem %s313, %s1120 [#allocation2]
          %v1122 = vld [vmem:[%s1121] sm:$0xff]
          %v1123 = vld [vmem:[%s1121 + $0x8] sm:$0xff]
          %v1124 = vld [vmem:[%s1121 + $0x10] sm:$0xff]
          %v1125 = vld [vmem:[%s1121 + $0x18] sm:$0xff]
          %s1126 = sadd.s32 0, 64
          %s1127 = scalar_lea.vmem %s313, %s1126 [#allocation2]
          %v1128 = vld [vmem:[%s1127] sm:$0xff]
          %v1129 = vld [vmem:[%s1127 + $0x8] sm:$0xff]
          %v1130 = vld [vmem:[%s1127 + $0x10] sm:$0xff]
          %v1131 = vld [vmem:[%s1127 + $0x18] sm:$0xff]
          %s1132 = sadd.s32 0, 96
          %s1133 = scalar_lea.vmem %s313, %s1132 [#allocation2]
          %v1134 = vld [vmem:[%s1133] sm:$0xff]
          %v1135 = vld [vmem:[%s1133 + $0x8] sm:$0xff]
          %v1136 = vld [vmem:[%s1133 + $0x10] sm:$0xff]
          %v1137 = vld [vmem:[%s1133 + $0x18] sm:$0xff]
          %s1138 = sadd.s32 0, 128
          %s1139 = scalar_lea.vmem %s313, %s1138 [#allocation2]
          %v1140 = vld [vmem:[%s1139] sm:$0xff]
          %v1141 = vld [vmem:[%s1139 + $0x8] sm:$0xff]
          %v1142 = vld [vmem:[%s1139 + $0x10] sm:$0xff]
          %v1143 = vld [vmem:[%s1139 + $0x18] sm:$0xff]
          %s1144 = sadd.s32 0, 160
          %s1145 = scalar_lea.vmem %s313, %s1144 [#allocation2]
          %v1146 = vld [vmem:[%s1145] sm:$0xff]
          %v1147 = vld [vmem:[%s1145 + $0x8] sm:$0xff]
          %v1148 = vld [vmem:[%s1145 + $0x10] sm:$0xff]
          %v1149 = vld [vmem:[%s1145 + $0x18] sm:$0xff]
          %s1150 = sadd.s32 0, 192
          %s1151 = scalar_lea.vmem %s313, %s1150 [#allocation2]
          %v1152 = vld [vmem:[%s1151] sm:$0xff]
          %v1153 = vld [vmem:[%s1151 + $0x8] sm:$0xff]
          %v1154 = vld [vmem:[%s1151 + $0x10] sm:$0xff]
          %v1155 = vld [vmem:[%s1151 + $0x18] sm:$0xff]
          %s1156 = sadd.s32 0, 224
          %s1157 = scalar_lea.vmem %s313, %s1156 [#allocation2]
          %v1158 = vld [vmem:[%s1157] sm:$0xff]
          %v1159 = vld [vmem:[%s1157 + $0x8] sm:$0xff]
          %v1160 = vld [vmem:[%s1157 + $0x10] sm:$0xff]
          %v1161 = vld [vmem:[%s1157 + $0x18] sm:$0xff]
          %s1162 = sadd.s32 0, 256
          %s1163 = scalar_lea.vmem %s313, %s1162 [#allocation2]
          %v1164 = vld [vmem:[%s1163] sm:$0xff]
          %v1165 = vld [vmem:[%s1163 + $0x8] sm:$0xff]
          %v1166 = vld [vmem:[%s1163 + $0x10] sm:$0xff]
          %v1167 = vld [vmem:[%s1163 + $0x18] sm:$0xff]
          %v1168 = vmul.f32 %v1116, %v1116
          %v1169 = vmul.f32 %v1117, %v1117
          %v1170 = vmul.f32 %v1118, %v1118
          %v1171 = vmul.f32 %v1119, %v1119
          %v1172 = vmul.f32 %v1122, %v1122
          %v1173 = vmul.f32 %v1123, %v1123
          %v1174 = vmul.f32 %v1124, %v1124
          %v1175 = vmul.f32 %v1125, %v1125
          %v1176 = vadd.f32 %v1168, %v1172
          %v1177 = vadd.f32 %v1169, %v1173
          %v1178 = vadd.f32 %v1170, %v1174
          %v1179 = vadd.f32 %v1171, %v1175
          %v1180 = vmul.f32 %v1128, %v1128
          %v1181 = vmul.f32 %v1129, %v1129
          %v1182 = vmul.f32 %v1130, %v1130
          %v1183 = vmul.f32 %v1131, %v1131
          %v1184 = vadd.f32 %v1176, %v1180
          %v1185 = vadd.f32 %v1177, %v1181
          %v1186 = vadd.f32 %v1178, %v1182
          %v1187 = vadd.f32 %v1179, %v1183
          %v1188 = vmul.f32 %v1134, %v1116
          %v1189 = vmul.f32 %v1135, %v1117
          %v1190 = vmul.f32 %v1136, %v1118
          %v1191 = vmul.f32 %v1137, %v1119
          %v1192 = vmul.f32 %v1140, %v1122
          %v1193 = vmul.f32 %v1141, %v1123
          %v1194 = vmul.f32 %v1142, %v1124
          %v1195 = vmul.f32 %v1143, %v1125
          %v1196 = vadd.f32 %v1188, %v1192
          %v1197 = vadd.f32 %v1189, %v1193
          %v1198 = vadd.f32 %v1190, %v1194
          %v1199 = vadd.f32 %v1191, %v1195
          %v1200 = vmul.f32 %v1146, %v1128
          %v1201 = vmul.f32 %v1147, %v1129
          %v1202 = vmul.f32 %v1148, %v1130
          %v1203 = vmul.f32 %v1149, %v1131
          %v1204 = vadd.f32 %v1196, %v1200
          %v1205 = vadd.f32 %v1197, %v1201
          %v1206 = vadd.f32 %v1198, %v1202
          %v1207 = vadd.f32 %v1199, %v1203
          %v1208 = vmul.f32 %v1152, %v1116
          %v1209 = vmul.f32 %v1153, %v1117
          %v1210 = vmul.f32 %v1154, %v1118
          %v1211 = vmul.f32 %v1155, %v1119
          %v1212 = vmul.f32 %v1158, %v1122
          %v1213 = vmul.f32 %v1159, %v1123
          %v1214 = vmul.f32 %v1160, %v1124
          %v1215 = vmul.f32 %v1161, %v1125
          %v1216 = vadd.f32 %v1208, %v1212
          %v1217 = vadd.f32 %v1209, %v1213
          %v1218 = vadd.f32 %v1210, %v1214
          %v1219 = vadd.f32 %v1211, %v1215
          %v1220 = vmul.f32 %v1164, %v1128
          %v1221 = vmul.f32 %v1165, %v1129
          %v1222 = vmul.f32 %v1166, %v1130
          %v1223 = vmul.f32 %v1167, %v1131
          %v1224 = vadd.f32 %v1216, %v1220
          %v1225 = vadd.f32 %v1217, %v1221
          %v1226 = vadd.f32 %v1218, %v1222
          %v1227 = vadd.f32 %v1219, %v1223
          %v1228 = vmul.f32 %v1134, %v1152
          %v1229 = vmul.f32 %v1135, %v1153
          %v1230 = vmul.f32 %v1136, %v1154
          %v1231 = vmul.f32 %v1137, %v1155
          %v1232 = vmul.f32 %v1140, %v1158
          %v1233 = vmul.f32 %v1141, %v1159
          %v1234 = vmul.f32 %v1142, %v1160
          %v1235 = vmul.f32 %v1143, %v1161
          %v1236 = vadd.f32 %v1228, %v1232
          %v1237 = vadd.f32 %v1229, %v1233
          %v1238 = vadd.f32 %v1230, %v1234
          %v1239 = vadd.f32 %v1231, %v1235
          %v1240 = vmul.f32 %v1146, %v1164
          %v1241 = vmul.f32 %v1147, %v1165
          %v1242 = vmul.f32 %v1148, %v1166
          %v1243 = vmul.f32 %v1149, %v1167
          %v1244 = vadd.f32 %v1236, %v1240
          %v1245 = vadd.f32 %v1237, %v1241
          %v1246 = vadd.f32 %v1238, %v1242
          %v1247 = vadd.f32 %v1239, %v1243
          %v1248 = vmul.f32 %v1140, %v1128
          %v1249 = vmul.f32 %v1141, %v1129
          %v1250 = vmul.f32 %v1142, %v1130
          %v1251 = vmul.f32 %v1143, %v1131
          %v1252 = vmul.f32 %v1146, %v1122
          %v1253 = vmul.f32 %v1147, %v1123
          %v1254 = vmul.f32 %v1148, %v1124
          %v1255 = vmul.f32 %v1149, %v1125
          %v1256 = vsub.f32 %v1248, %v1252
          %v1257 = vsub.f32 %v1249, %v1253
          %v1258 = vsub.f32 %v1250, %v1254
          %v1259 = vsub.f32 %v1251, %v1255
          %v1260 = vmul.f32 %v1146, %v1116
          %v1261 = vmul.f32 %v1147, %v1117
          %v1262 = vmul.f32 %v1148, %v1118
          %v1263 = vmul.f32 %v1149, %v1119
          %v1264 = vmul.f32 %v1134, %v1128
          %v1265 = vmul.f32 %v1135, %v1129
          %v1266 = vmul.f32 %v1136, %v1130
          %v1267 = vmul.f32 %v1137, %v1131
          %v1268 = vsub.f32 %v1260, %v1264
          %v1269 = vsub.f32 %v1261, %v1265
          %v1270 = vsub.f32 %v1262, %v1266
          %v1271 = vsub.f32 %v1263, %v1267
          %v1272 = vmul.f32 %v1134, %v1122
          %v1273 = vmul.f32 %v1135, %v1123
          %v1274 = vmul.f32 %v1136, %v1124
          %v1275 = vmul.f32 %v1137, %v1125
          %v1276 = vmul.f32 %v1140, %v1116
          %v1277 = vmul.f32 %v1141, %v1117
          %v1278 = vmul.f32 %v1142, %v1118
          %v1279 = vmul.f32 %v1143, %v1119
          %v1280 = vsub.f32 %v1272, %v1276
          %v1281 = vsub.f32 %v1273, %v1277
          %v1282 = vsub.f32 %v1274, %v1278
          %v1283 = vsub.f32 %v1275, %v1279
          %v1284 = vmul.f32 %v1122, %v1164
          %v1285 = vmul.f32 %v1123, %v1165
          %v1286 = vmul.f32 %v1124, %v1166
          %v1287 = vmul.f32 %v1125, %v1167
          %v1288 = vmul.f32 %v1128, %v1158
          %v1289 = vmul.f32 %v1129, %v1159
          %v1290 = vmul.f32 %v1130, %v1160
          %v1291 = vmul.f32 %v1131, %v1161
          %v1292 = vsub.f32 %v1284, %v1288
          %v1293 = vsub.f32 %v1285, %v1289
          %v1294 = vsub.f32 %v1286, %v1290
          %v1295 = vsub.f32 %v1287, %v1291
          %v1296 = vmul.f32 %v1128, %v1152
          %v1297 = vmul.f32 %v1129, %v1153
          %v1298 = vmul.f32 %v1130, %v1154
          %v1299 = vmul.f32 %v1131, %v1155
          %v1300 = vmul.f32 %v1116, %v1164
          %v1301 = vmul.f32 %v1117, %v1165
          %v1302 = vmul.f32 %v1118, %v1166
          %v1303 = vmul.f32 %v1119, %v1167
          %v1304 = vsub.f32 %v1296, %v1300
          %v1305 = vsub.f32 %v1297, %v1301
          %v1306 = vsub.f32 %v1298, %v1302
          %v1307 = vsub.f32 %v1299, %v1303
          %v1308 = vmul.f32 %v1116, %v1158
          %v1309 = vmul.f32 %v1117, %v1159
          %v1310 = vmul.f32 %v1118, %v1160
          %v1311 = vmul.f32 %v1119, %v1161
          %v1312 = vmul.f32 %v1122, %v1152
          %v1313 = vmul.f32 %v1123, %v1153
          %v1314 = vmul.f32 %v1124, %v1154
          %v1315 = vmul.f32 %v1125, %v1155
          %v1316 = vsub.f32 %v1308, %v1312
          %v1317 = vsub.f32 %v1309, %v1313
          %v1318 = vsub.f32 %v1310, %v1314
          %v1319 = vsub.f32 %v1311, %v1315
          %v1320 = vmul.f32 %v1256, %v1256
          %v1321 = vmul.f32 %v1257, %v1257
          %v1322 = vmul.f32 %v1258, %v1258
          %v1323 = vmul.f32 %v1259, %v1259
          %v1324 = vmul.f32 %v1268, %v1268
          %v1325 = vmul.f32 %v1269, %v1269
          %v1326 = vmul.f32 %v1270, %v1270
          %v1327 = vmul.f32 %v1271, %v1271
          %v1328 = vadd.f32 %v1320, %v1324
          %v1329 = vadd.f32 %v1321, %v1325
          %v1330 = vadd.f32 %v1322, %v1326
          %v1331 = vadd.f32 %v1323, %v1327
          %v1332 = vmul.f32 %v1280, %v1280
          %v1333 = vmul.f32 %v1281, %v1281
          %v1334 = vmul.f32 %v1282, %v1282
          %v1335 = vmul.f32 %v1283, %v1283
          %v1336 = vadd.f32 %v1328, %v1332
          %v1337 = vadd.f32 %v1329, %v1333
          %v1338 = vadd.f32 %v1330, %v1334
          %v1339 = vadd.f32 %v1331, %v1335
          %v1340 = vmul.f32 %v1292, %v1292
          %v1341 = vmul.f32 %v1293, %v1293
          %v1342 = vmul.f32 %v1294, %v1294
          %v1343 = vmul.f32 %v1295, %v1295
          %v1344 = vmul.f32 %v1304, %v1304
          %v1345 = vmul.f32 %v1305, %v1305
          %v1346 = vmul.f32 %v1306, %v1306
          %v1347 = vmul.f32 %v1307, %v1307
          %v1348 = vadd.f32 %v1340, %v1344
          %v1349 = vadd.f32 %v1341, %v1345
          %v1350 = vadd.f32 %v1342, %v1346
          %v1351 = vadd.f32 %v1343, %v1347
          %v1352 = vmul.f32 %v1316, %v1316
          %v1353 = vmul.f32 %v1317, %v1317
          %v1354 = vmul.f32 %v1318, %v1318
          %v1355 = vmul.f32 %v1319, %v1319
          %v1356 = vadd.f32 %v1348, %v1352
          %v1357 = vadd.f32 %v1349, %v1353
          %v1358 = vadd.f32 %v1350, %v1354
          %v1359 = vadd.f32 %v1351, %v1355
          %v1360 = vmul.f32 %v1256, %v1152
          %v1361 = vmul.f32 %v1257, %v1153
          %v1362 = vmul.f32 %v1258, %v1154
          %v1363 = vmul.f32 %v1259, %v1155
          %v1364 = vmul.f32 %v1268, %v1158
          %v1365 = vmul.f32 %v1269, %v1159
          %v1366 = vmul.f32 %v1270, %v1160
          %v1367 = vmul.f32 %v1271, %v1161
          %v1368 = vadd.f32 %v1360, %v1364
          %v1369 = vadd.f32 %v1361, %v1365
          %v1370 = vadd.f32 %v1362, %v1366
          %v1371 = vadd.f32 %v1363, %v1367
          %v1372 = vmul.f32 %v1280, %v1164
          %v1373 = vmul.f32 %v1281, %v1165
          %v1374 = vmul.f32 %v1282, %v1166
          %v1375 = vmul.f32 %v1283, %v1167
          %v1376 = vadd.f32 %v1368, %v1372
          %v1377 = vadd.f32 %v1369, %v1373
          %v1378 = vadd.f32 %v1370, %v1374
          %v1379 = vadd.f32 %v1371, %v1375
          %v1380 = vrsqrt.pop %v1184
          %v1381 = vmul.f32 %v1184, %v1380
          %vm1382 = vcmp.eq.f32.partialorder %v1184, inf
          %v1383 = vsel %vm1382, %v1184, %v1381
          %vm1384 = vcmp.eq.f32.partialorder %v1184, 0.0
          %v1385 = vand.u32 %v1184, 2147483648
          %v1386 = vsel %vm1384, %v1385, %v1383
          %v1387 = vrsqrt.pop %v1185
          %v1388 = vmul.f32 %v1185, %v1387
          %vm1389 = vcmp.eq.f32.partialorder %v1185, inf
          %v1390 = vsel %vm1389, %v1185, %v1388
          %vm1391 = vcmp.eq.f32.partialorder %v1185, 0.0
          %v1392 = vand.u32 %v1185, 2147483648
          %v1393 = vsel %vm1391, %v1392, %v1390
          %v1394 = vrsqrt.pop %v1186
          %v1395 = vmul.f32 %v1186, %v1394
          %vm1396 = vcmp.eq.f32.partialorder %v1186, inf
          %v1397 = vsel %vm1396, %v1186, %v1395
          %vm1398 = vcmp.eq.f32.partialorder %v1186, 0.0
          %v1399 = vand.u32 %v1186, 2147483648
          %v1400 = vsel %vm1398, %v1399, %v1397
          %v1401 = vrsqrt.pop %v1187
          %v1402 = vmul.f32 %v1187, %v1401
          %vm1403 = vcmp.eq.f32.partialorder %v1187, inf
          %v1404 = vsel %vm1403, %v1187, %v1402
          %vm1405 = vcmp.eq.f32.partialorder %v1187, 0.0
          %v1406 = vand.u32 %v1187, 2147483648
          %v1407 = vsel %vm1405, %v1406, %v1404
          %v1408 = vsub.f32 %v1386, 1.329
          %v1409 = vsub.f32 %v1393, 1.329
          %v1410 = vsub.f32 %v1400, 1.329
          %v1411 = vsub.f32 %v1407, 1.329
          %v1412 = vmul.f32 %v1408, %v1408
          %v1413 = vmul.f32 %v1409, %v1409
          %v1414 = vmul.f32 %v1410, %v1410
          %v1415 = vmul.f32 %v1411, %v1411
          %v1416 = vmul.f32 %v1412, 50.0
          %v1417 = vmul.f32 %v1413, 50.0
          %v1418 = vmul.f32 %v1414, 50.0
          %v1419 = vmul.f32 %v1415, 50.0
          %v1420 = vrsqrt.pop %v1336
          %v1421 = vmul.f32 %v1336, %v1420
          %vm1422 = vcmp.eq.f32.partialorder %v1336, inf
          %v1423 = vsel %vm1422, %v1336, %v1421
          %vm1424 = vcmp.eq.f32.partialorder %v1336, 0.0
          %v1425 = vand.u32 %v1336, 2147483648
          %v1426 = vsel %vm1424, %v1425, %v1423
          %v1427 = vrsqrt.pop %v1337
          %v1428 = vmul.f32 %v1337, %v1427
          %vm1429 = vcmp.eq.f32.partialorder %v1337, inf
          %v1430 = vsel %vm1429, %v1337, %v1428
          %vm1431 = vcmp.eq.f32.partialorder %v1337, 0.0
          %v1432 = vand.u32 %v1337, 2147483648
          %v1433 = vsel %vm1431, %v1432, %v1430
          %v1434 = vrsqrt.pop %v1338
          %v1435 = vmul.f32 %v1338, %v1434
          %vm1436 = vcmp.eq.f32.partialorder %v1338, inf
          %v1437 = vsel %vm1436, %v1338, %v1435
          %vm1438 = vcmp.eq.f32.partialorder %v1338, 0.0
          %v1439 = vand.u32 %v1338, 2147483648
          %v1440 = vsel %vm1438, %v1439, %v1437
          %v1441 = vrsqrt.pop %v1339
          %v1442 = vmul.f32 %v1339, %v1441
          %vm1443 = vcmp.eq.f32.partialorder %v1339, inf
          %v1444 = vsel %vm1443, %v1339, %v1442
          %vm1445 = vcmp.eq.f32.partialorder %v1339, 0.0
          %v1446 = vand.u32 %v1339, 2147483648
          %v1447 = vsel %vm1445, %v1446, %v1444
          %v1448 = vand.u32 2147483647, %v1204
          %v1449 = vand.u32 2147483647, %v1205
          %v1450 = vand.u32 2147483647, %v1206
          %v1451 = vand.u32 2147483647, %v1207
          %v1452 = vmin.f32 %v1426, %v1448
          %v1453 = vmin.f32 %v1433, %v1449
          %v1454 = vmin.f32 %v1440, %v1450
          %v1455 = vmin.f32 %v1447, %v1451
          %v1456 = vmax.f32 %v1426, %v1448
          %v1457 = vmax.f32 %v1433, %v1449
          %v1458 = vmax.f32 %v1440, %v1450
          %v1459 = vmax.f32 %v1447, %v1451
          %v1460 = vmax.f32 %v1456, 1e-37
          %v1461 = vmax.f32 %v1457, 1e-37
          %v1462 = vmax.f32 %v1458, 1e-37
          %v1463 = vmax.f32 %v1459, 1e-37
          %v1464 = vrcp.pop %v1460
          %v1465 = vrcp.pop %v1461
          %v1466 = vrcp.pop %v1462
          %v1467 = vrcp.pop %v1463
          %v1468 = vmul.f32 %v1460, %v1464
          %v1469 = vmul.f32 %v1461, %v1465
          %v1470 = vmul.f32 %v1462, %v1466
          %v1471 = vmul.f32 %v1463, %v1467
          %v1472 = vsub.f32 2.0, %v1468
          %v1473 = vsub.f32 2.0, %v1469
          %v1474 = vsub.f32 2.0, %v1470
          %v1475 = vsub.f32 2.0, %v1471
          %v1476 = vmul.f32 %v1464, %v1472
          %v1477 = vmul.f32 %v1465, %v1473
          %v1478 = vmul.f32 %v1466, %v1474
          %v1479 = vmul.f32 %v1467, %v1475
          %v1480 = vmul.f32 %v1452, %v1476
          %v1481 = vmul.f32 %v1453, %v1477
          %v1482 = vmul.f32 %v1454, %v1478
          %v1483 = vmul.f32 %v1455, %v1479
          %vm1484 = vcmp.gt.f32.partialorder %v1480, 0.41421357
          %vm1485 = vcmp.gt.f32.partialorder %v1481, 0.41421357
          %vm1486 = vcmp.gt.f32.partialorder %v1482, 0.41421357
          %vm1487 = vcmp.gt.f32.partialorder %v1483, 0.41421357
          %v1488 = vsub.f32 %v1480, 1.0
          %v1489 = vsub.f32 %v1481, 1.0
          %v1490 = vsub.f32 %v1482, 1.0
          %v1491 = vsub.f32 %v1483, 1.0
          %v1492 = vsel %vm1484, %v1488, %v1480
          %v1493 = vsel %vm1485, %v1489, %v1481
          %v1494 = vsel %vm1486, %v1490, %v1482
          %v1495 = vsel %vm1487, %v1491, %v1483
          %v1496 = vadd.f32 %v1480, 1.0
          %v1497 = vadd.f32 %v1481, 1.0
          %v1498 = vadd.f32 %v1482, 1.0
          %v1499 = vadd.f32 %v1483, 1.0
          %v1500 = vsel %vm1484, %v1496, 1.0
          %v1501 = vsel %vm1485, %v1497, 1.0
          %v1502 = vsel %vm1486, %v1498, 1.0
          %v1503 = vsel %vm1487, %v1499, 1.0
          %v1504 = vrcp.pop %v1500
          %v1505 = vrcp.pop %v1501
          %v1506 = vrcp.pop %v1502
          %v1507 = vrcp.pop %v1503
          %v1508 = vmul.f32 %v1500, %v1504
          %v1509 = vmul.f32 %v1501, %v1505
          %v1510 = vmul.f32 %v1502, %v1506
          %v1511 = vmul.f32 %v1503, %v1507
          %v1512 = vsub.f32 2.0, %v1508
          %v1513 = vsub.f32 2.0, %v1509
          %v1514 = vsub.f32 2.0, %v1510
          %v1515 = vsub.f32 2.0, %v1511
          %v1516 = vmul.f32 %v1504, %v1512
          %v1517 = vmul.f32 %v1505, %v1513
          %v1518 = vmul.f32 %v1506, %v1514
          %v1519 = vmul.f32 %v1507, %v1515
          %v1520 = vmul.f32 %v1492, %v1516
          %v1521 = vmul.f32 %v1493, %v1517
          %v1522 = vmul.f32 %v1494, %v1518
          %v1523 = vmul.f32 %v1495, %v1519
          %v1524 = vsel %vm1484, 0.7853982, 0.0
          %v1525 = vsel %vm1485, 0.7853982, 0.0
          %v1526 = vsel %vm1486, 0.7853982, 0.0
          %v1527 = vsel %vm1487, 0.7853982, 0.0
          %v1528 = vmul.f32 %v1520, %v1520
          %v1529 = vmul.f32 %v1521, %v1521
          %v1530 = vmul.f32 %v1522, %v1522
          %v1531 = vmul.f32 %v1523, %v1523
          %v1532 = vmul.f32 %v1528, 0.080537446
          %v1533 = vmul.f32 %v1529, 0.080537446
          %v1534 = vmul.f32 %v1530, 0.080537446
          %v1535 = vmul.f32 %v1531, 0.080537446
          %v1536 = vsub.f32 %v1532, 0.13877685
          %v1537 = vsub.f32 %v1533, 0.13877685
          %v1538 = vsub.f32 %v1534, 0.13877685
          %v1539 = vsub.f32 %v1535, 0.13877685
          %v1540 = vmul.f32 %v1536, %v1528
          %v1541 = vmul.f32 %v1537, %v1529
          %v1542 = vmul.f32 %v1538, %v1530
          %v1543 = vmul.f32 %v1539, %v1531
          %v1544 = vadd.f32 %v1540, 0.19977711
          %v1545 = vadd.f32 %v1541, 0.19977711
          %v1546 = vadd.f32 %v1542, 0.19977711
          %v1547 = vadd.f32 %v1543, 0.19977711
          %v1548 = vmul.f32 %v1544, %v1528
          %v1549 = vmul.f32 %v1545, %v1529
          %v1550 = vmul.f32 %v1546, %v1530
          %v1551 = vmul.f32 %v1547, %v1531
          %v1552 = vsub.f32 %v1548, 0.3333295
          %v1553 = vsub.f32 %v1549, 0.3333295
          %v1554 = vsub.f32 %v1550, 0.3333295
          %v1555 = vsub.f32 %v1551, 0.3333295
          %v1556 = vadd.f32 %v1524, %v1520
          %v1557 = vadd.f32 %v1525, %v1521
          %v1558 = vadd.f32 %v1526, %v1522
          %v1559 = vadd.f32 %v1527, %v1523
          %v1560 = vmul.f32 %v1520, %v1528
          %v1561 = vmul.f32 %v1521, %v1529
          %v1562 = vmul.f32 %v1522, %v1530
          %v1563 = vmul.f32 %v1523, %v1531
          %v1564 = vmul.f32 %v1560, %v1552
          %v1565 = vmul.f32 %v1561, %v1553
          %v1566 = vmul.f32 %v1562, %v1554
          %v1567 = vmul.f32 %v1563, %v1555
          %v1568 = vadd.f32 %v1556, %v1564
          %v1569 = vadd.f32 %v1557, %v1565
          %v1570 = vadd.f32 %v1558, %v1566
          %v1571 = vadd.f32 %v1559, %v1567
          %vm1572 = vcmp.gt.f32.partialorder %v1426, %v1448
          %vm1573 = vcmp.gt.f32.partialorder %v1433, %v1449
          %vm1574 = vcmp.gt.f32.partialorder %v1440, %v1450
          %vm1575 = vcmp.gt.f32.partialorder %v1447, %v1451
          %v1576 = vsub.f32 1.5707964, %v1568
          %v1577 = vsub.f32 1.5707964, %v1569
          %v1578 = vsub.f32 1.5707964, %v1570
          %v1579 = vsub.f32 1.5707964, %v1571
          %v1580 = vsel %vm1572, %v1576, %v1568
          %v1581 = vsel %vm1573, %v1577, %v1569
          %v1582 = vsel %vm1574, %v1578, %v1570
          %v1583 = vsel %vm1575, %v1579, %v1571
          %vm1584 = vcmp.lt.f32.partialorder %v1204, 0.0
          %vm1585 = vcmp.lt.f32.partialorder %v1205, 0.0
          %vm1586 = vcmp.lt.f32.partialorder %v1206, 0.0
          %vm1587 = vcmp.lt.f32.partialorder %v1207, 0.0
          %v1588 = vsub.f32 3.1415927, %v1580
          %v1589 = vsub.f32 3.1415927, %v1581
          %v1590 = vsub.f32 3.1415927, %v1582
          %v1591 = vsub.f32 3.1415927, %v1583
          %v1592 = vsel %vm1584, %v1588, %v1580
          %v1593 = vsel %vm1585, %v1589, %v1581
          %v1594 = vsel %vm1586, %v1590, %v1582
          %v1595 = vsel %vm1587, %v1591, %v1583
          %v1596 = vrsqrt.pop %v1356
          %v1597 = vmul.f32 %v1356, %v1596
          %vm1598 = vcmp.eq.f32.partialorder %v1356, inf
          %v1599 = vsel %vm1598, %v1356, %v1597
          %vm1600 = vcmp.eq.f32.partialorder %v1356, 0.0
          %v1601 = vand.u32 %v1356, 2147483648
          %v1602 = vsel %vm1600, %v1601, %v1599
          %v1603 = vrsqrt.pop %v1357
          %v1604 = vmul.f32 %v1357, %v1603
          %vm1605 = vcmp.eq.f32.partialorder %v1357, inf
          %v1606 = vsel %vm1605, %v1357, %v1604
          %vm1607 = vcmp.eq.f32.partialorder %v1357, 0.0
          %v1608 = vand.u32 %v1357, 2147483648
          %v1609 = vsel %vm1607, %v1608, %v1606
          %v1610 = vrsqrt.pop %v1358
          %v1611 = vmul.f32 %v1358, %v1610
          %vm1612 = vcmp.eq.f32.partialorder %v1358, inf
          %v1613 = vsel %vm1612, %v1358, %v1611
          %vm1614 = vcmp.eq.f32.partialorder %v1358, 0.0
          %v1615 = vand.u32 %v1358, 2147483648
          %v1616 = vsel %vm1614, %v1615, %v1613
          %v1617 = vrsqrt.pop %v1359
          %v1618 = vmul.f32 %v1359, %v1617
          %vm1619 = vcmp.eq.f32.partialorder %v1359, inf
          %v1620 = vsel %vm1619, %v1359, %v1618
          %vm1621 = vcmp.eq.f32.partialorder %v1359, 0.0
          %v1622 = vand.u32 %v1359, 2147483648
          %v1623 = vsel %vm1621, %v1622, %v1620
          %v1624 = vsub.f32 0.0, %v1224
          %v1625 = vsub.f32 0.0, %v1225
          %v1626 = vsub.f32 0.0, %v1226
          %v1627 = vsub.f32 0.0, %v1227
          %v1628 = vand.u32 2147483647, %v1624
          %v1629 = vand.u32 2147483647, %v1625
          %v1630 = vand.u32 2147483647, %v1626
          %v1631 = vand.u32 2147483647, %v1627
          %v1632 = vmin.f32 %v1602, %v1628
          %v1633 = vmin.f32 %v1609, %v1629
          %v1634 = vmin.f32 %v1616, %v1630
          %v1635 = vmin.f32 %v1623, %v1631
          %v1636 = vmax.f32 %v1602, %v1628
          %v1637 = vmax.f32 %v1609, %v1629
          %v1638 = vmax.f32 %v1616, %v1630
          %v1639 = vmax.f32 %v1623, %v1631
          %v1640 = vmax.f32 %v1636, 1e-37
          %v1641 = vmax.f32 %v1637, 1e-37
          %v1642 = vmax.f32 %v1638, 1e-37
          %v1643 = vmax.f32 %v1639, 1e-37
          %v1644 = vrcp.pop %v1640
          %v1645 = vrcp.pop %v1641
          %v1646 = vrcp.pop %v1642
          %v1647 = vrcp.pop %v1643
          %v1648 = vmul.f32 %v1640, %v1644
          %v1649 = vmul.f32 %v1641, %v1645
          %v1650 = vmul.f32 %v1642, %v1646
          %v1651 = vmul.f32 %v1643, %v1647
          %v1652 = vsub.f32 2.0, %v1648
          %v1653 = vsub.f32 2.0, %v1649
          %v1654 = vsub.f32 2.0, %v1650
          %v1655 = vsub.f32 2.0, %v1651
          %v1656 = vmul.f32 %v1644, %v1652
          %v1657 = vmul.f32 %v1645, %v1653
          %v1658 = vmul.f32 %v1646, %v1654
          %v1659 = vmul.f32 %v1647, %v1655
          %v1660 = vmul.f32 %v1632, %v1656
          %v1661 = vmul.f32 %v1633, %v1657
          %v1662 = vmul.f32 %v1634, %v1658
          %v1663 = vmul.f32 %v1635, %v1659
          %vm1664 = vcmp.gt.f32.partialorder %v1660, 0.41421357
          %vm1665 = vcmp.gt.f32.partialorder %v1661, 0.41421357
          %vm1666 = vcmp.gt.f32.partialorder %v1662, 0.41421357
          %vm1667 = vcmp.gt.f32.partialorder %v1663, 0.41421357
          %v1668 = vsub.f32 %v1660, 1.0
          %v1669 = vsub.f32 %v1661, 1.0
          %v1670 = vsub.f32 %v1662, 1.0
          %v1671 = vsub.f32 %v1663, 1.0
          %v1672 = vsel %vm1664, %v1668, %v1660
          %v1673 = vsel %vm1665, %v1669, %v1661
          %v1674 = vsel %vm1666, %v1670, %v1662
          %v1675 = vsel %vm1667, %v1671, %v1663
          %v1676 = vadd.f32 %v1660, 1.0
          %v1677 = vadd.f32 %v1661, 1.0
          %v1678 = vadd.f32 %v1662, 1.0
          %v1679 = vadd.f32 %v1663, 1.0
          %v1680 = vsel %vm1664, %v1676, 1.0
          %v1681 = vsel %vm1665, %v1677, 1.0
          %v1682 = vsel %vm1666, %v1678, 1.0
          %v1683 = vsel %vm1667, %v1679, 1.0
          %v1684 = vrcp.pop %v1680
          %v1685 = vrcp.pop %v1681
          %v1686 = vrcp.pop %v1682
          %v1687 = vrcp.pop %v1683
          %v1688 = vmul.f32 %v1680, %v1684
          %v1689 = vmul.f32 %v1681, %v1685
          %v1690 = vmul.f32 %v1682, %v1686
          %v1691 = vmul.f32 %v1683, %v1687
          %v1692 = vsub.f32 2.0, %v1688
          %v1693 = vsub.f32 2.0, %v1689
          %v1694 = vsub.f32 2.0, %v1690
          %v1695 = vsub.f32 2.0, %v1691
          %v1696 = vmul.f32 %v1684, %v1692
          %v1697 = vmul.f32 %v1685, %v1693
          %v1698 = vmul.f32 %v1686, %v1694
          %v1699 = vmul.f32 %v1687, %v1695
          %v1700 = vmul.f32 %v1672, %v1696
          %v1701 = vmul.f32 %v1673, %v1697
          %v1702 = vmul.f32 %v1674, %v1698
          %v1703 = vmul.f32 %v1675, %v1699
          %v1704 = vsel %vm1664, 0.7853982, 0.0
          %v1705 = vsel %vm1665, 0.7853982, 0.0
          %v1706 = vsel %vm1666, 0.7853982, 0.0
          %v1707 = vsel %vm1667, 0.7853982, 0.0
          %v1708 = vmul.f32 %v1700, %v1700
          %v1709 = vmul.f32 %v1701, %v1701
          %v1710 = vmul.f32 %v1702, %v1702
          %v1711 = vmul.f32 %v1703, %v1703
          %v1712 = vmul.f32 %v1708, 0.080537446
          %v1713 = vmul.f32 %v1709, 0.080537446
          %v1714 = vmul.f32 %v1710, 0.080537446
          %v1715 = vmul.f32 %v1711, 0.080537446
          %v1716 = vsub.f32 %v1712, 0.13877685
          %v1717 = vsub.f32 %v1713, 0.13877685
          %v1718 = vsub.f32 %v1714, 0.13877685
          %v1719 = vsub.f32 %v1715, 0.13877685
          %v1720 = vmul.f32 %v1716, %v1708
          %v1721 = vmul.f32 %v1717, %v1709
          %v1722 = vmul.f32 %v1718, %v1710
          %v1723 = vmul.f32 %v1719, %v1711
          %v1724 = vadd.f32 %v1720, 0.19977711
          %v1725 = vadd.f32 %v1721, 0.19977711
          %v1726 = vadd.f32 %v1722, 0.19977711
          %v1727 = vadd.f32 %v1723, 0.19977711
          %v1728 = vmul.f32 %v1724, %v1708
          %v1729 = vmul.f32 %v1725, %v1709
          %v1730 = vmul.f32 %v1726, %v1710
          %v1731 = vmul.f32 %v1727, %v1711
          %v1732 = vsub.f32 %v1728, 0.3333295
          %v1733 = vsub.f32 %v1729, 0.3333295
          %v1734 = vsub.f32 %v1730, 0.3333295
          %v1735 = vsub.f32 %v1731, 0.3333295
          %v1736 = vadd.f32 %v1704, %v1700
          %v1737 = vadd.f32 %v1705, %v1701
          %v1738 = vadd.f32 %v1706, %v1702
          %v1739 = vadd.f32 %v1707, %v1703
          %v1740 = vmul.f32 %v1700, %v1708
          %v1741 = vmul.f32 %v1701, %v1709
          %v1742 = vmul.f32 %v1702, %v1710
          %v1743 = vmul.f32 %v1703, %v1711
          %v1744 = vmul.f32 %v1740, %v1732
          %v1745 = vmul.f32 %v1741, %v1733
          %v1746 = vmul.f32 %v1742, %v1734
          %v1747 = vmul.f32 %v1743, %v1735
          %v1748 = vadd.f32 %v1736, %v1744
          %v1749 = vadd.f32 %v1737, %v1745
          %v1750 = vadd.f32 %v1738, %v1746
          %v1751 = vadd.f32 %v1739, %v1747
          %vm1752 = vcmp.gt.f32.partialorder %v1602, %v1628
          %vm1753 = vcmp.gt.f32.partialorder %v1609, %v1629
          %vm1754 = vcmp.gt.f32.partialorder %v1616, %v1630
          %vm1755 = vcmp.gt.f32.partialorder %v1623, %v1631
          %v1756 = vsub.f32 1.5707964, %v1748
          %v1757 = vsub.f32 1.5707964, %v1749
          %v1758 = vsub.f32 1.5707964, %v1750
          %v1759 = vsub.f32 1.5707964, %v1751
          %v1760 = vsel %vm1752, %v1756, %v1748
          %v1761 = vsel %vm1753, %v1757, %v1749
          %v1762 = vsel %vm1754, %v1758, %v1750
          %v1763 = vsel %vm1755, %v1759, %v1751
          %vm1764 = vcmp.lt.f32.partialorder %v1624, 0.0
          %vm1765 = vcmp.lt.f32.partialorder %v1625, 0.0
          %vm1766 = vcmp.lt.f32.partialorder %v1626, 0.0
          %vm1767 = vcmp.lt.f32.partialorder %v1627, 0.0
          %v1768 = vsub.f32 3.1415927, %v1760
          %v1769 = vsub.f32 3.1415927, %v1761
          %v1770 = vsub.f32 3.1415927, %v1762
          %v1771 = vsub.f32 3.1415927, %v1763
          %v1772 = vsel %vm1764, %v1768, %v1760
          %v1773 = vsel %vm1765, %v1769, %v1761
          %v1774 = vsel %vm1766, %v1770, %v1762
          %v1775 = vsel %vm1767, %v1771, %v1763
          %v1776 = vmul.f32 %v1244, %v1184
          %v1777 = vmul.f32 %v1245, %v1185
          %v1778 = vmul.f32 %v1246, %v1186
          %v1779 = vmul.f32 %v1247, %v1187
          %v1780 = vmul.f32 %v1204, %v1224
          %v1781 = vmul.f32 %v1205, %v1225
          %v1782 = vmul.f32 %v1206, %v1226
          %v1783 = vmul.f32 %v1207, %v1227
          %v1784 = vsub.f32 %v1776, %v1780
          %v1785 = vsub.f32 %v1777, %v1781
          %v1786 = vsub.f32 %v1778, %v1782
          %v1787 = vsub.f32 %v1779, %v1783
          %v1788 = vmul.f32 %v1376, %v1376
          %v1789 = vmul.f32 %v1377, %v1377
          %v1790 = vmul.f32 %v1378, %v1378
          %v1791 = vmul.f32 %v1379, %v1379
          %v1792 = vmul.f32 %v1788, %v1184
          %v1793 = vmul.f32 %v1789, %v1185
          %v1794 = vmul.f32 %v1790, %v1186
          %v1795 = vmul.f32 %v1791, %v1187
          %v1796 = vmul.f32 %v1784, %v1784
          %v1797 = vmul.f32 %v1785, %v1785
          %v1798 = vmul.f32 %v1786, %v1786
          %v1799 = vmul.f32 %v1787, %v1787
          %v1800 = vadd.f32 %v1796, %v1792
          %v1801 = vadd.f32 %v1797, %v1793
          %v1802 = vadd.f32 %v1798, %v1794
          %v1803 = vadd.f32 %v1799, %v1795
          %v1804 = vmax.f32 %v1800, 1e-37
          %v1805 = vmax.f32 %v1801, 1e-37
          %v1806 = vmax.f32 %v1802, 1e-37
          %v1807 = vmax.f32 %v1803, 1e-37
          %v1808 = vrsqrt.pop %v1804
          %v1809 = vrsqrt.pop %v1805
          %v1810 = vrsqrt.pop %v1806
          %v1811 = vrsqrt.pop %v1807
          %vm1812 = vcmp.gt.f32.partialorder %v1800, 0.0
          %vm1813 = vcmp.gt.f32.partialorder %v1801, 0.0
          %vm1814 = vcmp.gt.f32.partialorder %v1802, 0.0
          %vm1815 = vcmp.gt.f32.partialorder %v1803, 0.0
          %v1816 = vmul.f32 %v1784, %v1808
          %v1817 = vmul.f32 %v1785, %v1809
          %v1818 = vmul.f32 %v1786, %v1810
          %v1819 = vmul.f32 %v1787, %v1811
          %v1820 = vsel %vm1812, %v1816, 1.0
          %v1821 = vsel %vm1813, %v1817, 1.0
          %v1822 = vsel %vm1814, %v1818, 1.0
          %v1823 = vsel %vm1815, %v1819, 1.0
          %v1824 = vsub.f32 %v1592, 2.0280726
          %v1825 = vsub.f32 %v1593, 2.0280726
          %v1826 = vsub.f32 %v1594, 2.0280726
          %v1827 = vsub.f32 %v1595, 2.0280726
          %v1828 = vmul.f32 %v1824, %v1824
          %v1829 = vmul.f32 %v1825, %v1825
          %v1830 = vmul.f32 %v1826, %v1826
          %v1831 = vmul.f32 %v1827, %v1827
          %v1832 = vsub.f32 %v1772, 2.1240656
          %v1833 = vsub.f32 %v1773, 2.1240656
          %v1834 = vsub.f32 %v1774, 2.1240656
          %v1835 = vsub.f32 %v1775, 2.1240656
          %v1836 = vmul.f32 %v1832, %v1832
          %v1837 = vmul.f32 %v1833, %v1833
          %v1838 = vmul.f32 %v1834, %v1834
          %v1839 = vmul.f32 %v1835, %v1835
          %v1840 = vadd.f32 %v1828, %v1836
          %v1841 = vadd.f32 %v1829, %v1837
          %v1842 = vadd.f32 %v1830, %v1838
          %v1843 = vadd.f32 %v1831, %v1839
          %v1844 = vmul.f32 %v1840, 50.0
          %v1845 = vmul.f32 %v1841, 50.0
          %v1846 = vmul.f32 %v1842, 50.0
          %v1847 = vmul.f32 %v1843, 50.0
          %v1848 = vmul.f32 %v1820, 100.0
          %v1849 = vmul.f32 %v1821, 100.0
          %v1850 = vmul.f32 %v1822, 100.0
          %v1851 = vmul.f32 %v1823, 100.0
          %v1852 = vadd.f32 %v1844, %v1848
          %v1853 = vadd.f32 %v1845, %v1849
          %v1854 = vadd.f32 %v1846, %v1850
          %v1855 = vadd.f32 %v1847, %v1851
          %v1856 = vlaneseq
          %v1857 = vshrl.u32 %v1856, 7
          %v1858 = vadd.s32 %v1857, 8
          %v1859 = vadd.s32 %v1857, 16
          %v1860 = vadd.s32 %v1857, 24
          %v1861 = vlaneseq
          %v1862 = vand.u32 %v1861, 127
          %v1863 = vstv 0
          %v1864 = vadd.s32 %v1863, %v1857
          %v1865 = vadd.s32 %v1863, %v1858
          %v1866 = vadd.s32 %v1863, %v1859
          %v1867 = vadd.s32 %v1863, %v1860
          %v1868 = vmul.u32 %v1864, 128
          %v1869 = vmul.u32 %v1865, 128
          %v1870 = vmul.u32 %v1866, 128
          %v1871 = vmul.u32 %v1867, 128
          %v1872 = vstv %s352
          %v1873 = vadd.s32 %v1872, %v1868
          %v1874 = vadd.s32 %v1872, %v1869
          %v1875 = vadd.s32 %v1872, %v1870
          %v1876 = vadd.s32 %v1872, %v1871
          %v1877 = vadd.s32 %v1873, %v1862
          %v1878 = vadd.s32 %v1874, %v1862
          %v1879 = vadd.s32 %v1875, %v1862
          %v1880 = vadd.s32 %v1876, %v1862
          %vm1881 = vcmp.lt.s32.totalorder %v1877, 30
          %vm1882 = vcmp.lt.s32.totalorder %v1878, 30
          %vm1883 = vcmp.lt.s32.totalorder %v1879, 30
          %vm1884 = vcmp.lt.s32.totalorder %v1880, 30
          %v1885 = vsel %vm1881, 1, 0
          %v1886 = vsel %vm1882, 1, 0
          %v1887 = vsel %vm1883, 1, 0
          %v1888 = vsel %vm1884, 1, 0
          %v1889 = vcvt.s32.f32 %v1885
          %v1890 = vcvt.s32.f32 %v1886
          %v1891 = vcvt.s32.f32 %v1887
          %v1892 = vcvt.s32.f32 %v1888
          %v1893 = vmul.f32 %v1416, %v1889
          %v1894 = vmul.f32 %v1417, %v1890
          %v1895 = vmul.f32 %v1418, %v1891
          %v1896 = vmul.f32 %v1419, %v1892
          %v1897 = vmul.f32 %v1852, %v1889
          %v1898 = vmul.f32 %v1853, %v1890
          %v1899 = vmul.f32 %v1854, %v1891
          %v1900 = vmul.f32 %v1855, %v1892
          %v1901 = vadd.f32 %v1893, %v1894
          %v1902 = vadd.f32 %v1901, %v1895
          %v1903 = vadd.f32 %v1902, %v1896
          %v1904 = vadd.f32 %v1903, 0.0
          %v1905 = vadd.f32 %v1897, %v1898
          %v1906 = vadd.f32 %v1905, %v1899
          %v1907 = vadd.f32 %v1906, %v1900
          %v1908 = vadd.f32 %v1907, 0.0
          %v1909 = vld [vmem:[%s340] sm:$0xff]
          %v1910 = vadd.f32 %v1909, %v1904
          %1911 = vst [vmem:[%s340] sm:$0xff] %v1910
          %v1912 = vld [vmem:[%s344] sm:$0xff]
          %v1913 = vadd.f32 %v1912, %v1908
          %1914 = vst [vmem:[%s344] sm:$0xff] %v1913
        $region74: #{_bond_restraint_impl.1} parent=57 // pred_fallthru
          _
        %p1915 = scmp.lt.s32.totalorder %s18, 1
        %s1916 = scalar_select %p1915, %s18, 1
        %s1917 = smul.addr %s1916, 8
        %s1918 = scalar_lea.vmem %s1, %s1917
        %p1919 = scmp.lt.s32.totalorder %s18, 1
        %s1920 = scalar_select %p1919, %s18, 1
        %s1921 = smul.addr %s1920, 8
        %s1922 = scalar_lea.vmem %s2, %s1921
        // Predicated region
        $region75: #{_bond_restraint_impl.1} parent=57 // pred_check
          %p1923 = pneg %p72
        $region76: #{_bond_restraint_impl.1} parent=57 // pred_check_branch
          %1925 = sbr.rel (%p1923) target = $region78
        $region77: #{_bond_restraint_impl.1} parent=57 // pred_region
          _
        $region78: #{_bond_restraint_impl.1} parent=57 // pred_fallthru
          _
        // Predicated region
        $region79: #{_bond_restraint_impl.1} parent=57 // pred_check
          %p1926 = pneg %p98
        $region80: #{_bond_restraint_impl.1} parent=57 // pred_check_branch
          %1928 = sbr.rel (%p1926) target = $region82
        $region81: #{_bond_restraint_impl.1} parent=57 // pred_region
          _
        $region82: #{_bond_restraint_impl.1} parent=57 // pred_fallthru
          _
      $region58: #{_bond_restraint_impl.1} parent=5 // pred_fallthru
        _
      %p1929 = scmp.le.s32.totalorder 2, %s9
      // Predicated region
      $region83: #{_bond_restraint_impl.1} parent=5 // pred_check
        %p1930 = pneg %p1929
      $region84: #{_bond_restraint_impl.1} parent=5 // pred_check_branch
        %1932 = sbr.rel (%p1930) target = $region86
      $region85: #{_bond_restraint_impl.1} parent=5 // pred_region
        %s1933 = ssub.s32 %s9, 2
        // Predicated region
        $region87: #{_bond_restraint_impl.1} parent=85 // pred_check
          %p1934 = pneg %p78
        $region88: #{_bond_restraint_impl.1} parent=85 // pred_check_branch
          %1936 = sbr.rel (%p1934) target = $region90
        $region89: #{_bond_restraint_impl.1} parent=85 // pred_region
          %p1937 = scmp.lt.s32.totalorder %s20, 1
          %s1938 = scalar_select %p1937, %s20, 1
          %s1939 = smul.addr %s1938, 8
          %s1940 = scalar_lea.vmem %s1, %s1939
        $region90: #{_bond_restraint_impl.1} parent=85 // pred_fallthru
          _
        // Predicated region
        $region91: #{_bond_restraint_impl.1} parent=85 // pred_check
          %p1941 = pneg %p104
        $region92: #{_bond_restraint_impl.1} parent=85 // pred_check_branch
          %1943 = sbr.rel (%p1941) target = $region94
        $region93: #{_bond_restraint_impl.1} parent=85 // pred_region
          %p1944 = scmp.lt.s32.totalorder %s20, 1
          %s1945 = scalar_select %p1944, %s20, 1
          %s1946 = smul.addr %s1945, 8
          %s1947 = scalar_lea.vmem %s2, %s1946
        $region94: #{_bond_restraint_impl.1} parent=85 // pred_fallthru
          _
      $region86: #{_bond_restraint_impl.1} parent=5 // pred_fallthru
        _
    $region6: #{_bond_restraint_impl.1} parent=1 // loop_footer
      %s13 = sadd.s32 1, %s9
    $region7: #{_bond_restraint_impl.1} parent=1 // loop_footer_branch
      %8 = sbr.rel target = $region3
    $region8: #{_bond_restraint_impl.1} parent=1 // loop_exit
      _

</llo_original>
